<compile_context>
chip_gen: v5e
topology: v5e:2x2
jax: 0.10.0
libtpu: 0.0.40
codegen_flags: <defaults>
</compile_context>

<pallas_src>
import functools
import math

import jax
import jax.numpy as jnp
from jax.experimental import pallas as pl
from jax.experimental.pallas import tpu as pltpu


def _cross_attn_kernel(tgt_ref, mem_ref, qpos_ref, kpos_ref,
                       wq_ref, wk_ref, wv_ref, wo_ref,
                       bq_ref, bk_ref, bv_ref, bo_ref,
                       gamma_ref, beta_ref,
                       out_ref, *, nhead, batch):
    # tgt/qpos: (L*B, E) rows ordered (l, b); mem/kpos: (S*B, E) rows ordered (s, b).
    # Weights: (E, E); bias / gamma / beta: (1, E).
    LB, E = tgt_ref.shape
    SB = mem_ref.shape[0]
    Dh = E // nhead

    tgt = tgt_ref[...].astype(jnp.float32)
    q_in = tgt + qpos_ref[...].astype(jnp.float32)
    mem = mem_ref[...].astype(jnp.float32)
    k_in = mem + kpos_ref[...].astype(jnp.float32)

    # Batched input projections over all rows (softmax scale pre-folded into wq/bq).
    q = jnp.dot(q_in, wq_ref[...], preferred_element_type=jnp.float32) + bq_ref[...]
    k = jnp.dot(k_in, wk_ref[...], preferred_element_type=jnp.float32) + bk_ref[...]
    v = jnp.dot(mem, wv_ref[...], preferred_element_type=jnp.float32) + bv_ref[...]

    # Additive bias keeping attention batch-block-diagonal: query row of batch b only
    # attends to key rows of the same batch b.
    row_b = jax.lax.broadcasted_iota(jnp.int32, (LB, SB), 0) % batch
    col_b = jax.lax.broadcasted_iota(jnp.int32, (LB, SB), 1) % batch
    batch_bias = jnp.where(row_b == col_b, 0.0, -1e30).astype(jnp.float32)

    wo = wo_ref[...]

    # Per-head attention; all batch rows are carried inside each matmul, and the head
    # concat + output projection are fused as an accumulated sum of per-head
    # (LB, Dh) @ (Dh, E) products (no lane-axis concatenate).
    attn_out = jnp.zeros((LB, E), jnp.float32)
    for h in range(nhead):
        qh = q[:, h * Dh:(h + 1) * Dh]                       # (LB, Dh)
        kh = k[:, h * Dh:(h + 1) * Dh]                       # (SB, Dh)
        vh = v[:, h * Dh:(h + 1) * Dh]                       # (SB, Dh)
        s = jax.lax.dot_general(qh, kh, (((1,), (1,)), ((), ())),
                                preferred_element_type=jnp.float32)  # (LB, SB)
        s = s + batch_bias
        s = s - jnp.max(s, axis=-1, keepdims=True)
        p = jnp.exp(s)
        p = p * pl.reciprocal(jnp.sum(p, axis=-1, keepdims=True), approx=False)
        oh = jnp.dot(p, vh, preferred_element_type=jnp.float32)       # (LB, Dh)
        attn_out = attn_out + jnp.dot(oh, wo[h * Dh:(h + 1) * Dh, :],
                                      preferred_element_type=jnp.float32)
    attn_out = attn_out + bo_ref[...]

    # Residual (dropout p=0.0 -> identity) + LayerNorm over the feature dim (eps=1e-5).
    x = tgt + attn_out
    mean = jnp.mean(x, axis=-1, keepdims=True)
    var = jnp.mean((x - mean) ** 2, axis=-1, keepdims=True)
    y = (x - mean) * jax.lax.rsqrt(var + 1e-5)
    out_ref[...] = (y * gamma_ref[...] + beta_ref[...]).astype(out_ref.dtype)
    # TODO(synk): memory_mask / memory_key_padding_mask are None in this setup and unsupported.


def cross_attention_layer(tgt, memory, pos, query_pos, params, nhead):
    """tgt:(L,B,E), memory/pos:(S,B,E), query_pos:(L,B,E) -> (L,B,E)."""
    wq, wk, wv, wo, bq, bk, bv, bo, gamma, beta = params
    L, B, E = tgt.shape
    S = memory.shape[0]
    Dh = E // nhead
    scale = 1.0 / math.sqrt(Dh)

    # Fold the 1/sqrt(Dh) softmax scale into the Q projection (host side, free).
    wq_s = (wq * scale).astype(wq.dtype)
    bq_s = (bq * scale).astype(bq.dtype)

    # (seq, batch, embed) -> (seq*batch, embed): contiguous reshape (no transpose,
    # no HBM data movement).
    tgt_f = tgt.reshape(L * B, E)
    qpos_f = query_pos.reshape(L * B, E)
    mem_f = memory.reshape(S * B, E)
    kpos_f = pos.reshape(S * B, E)

    bq2, bk2, bv2, bo2 = (x.reshape(1, E) for x in (bq_s, bk, bv, bo))
    gamma2, beta2 = gamma.reshape(1, E), beta.reshape(1, E)

    def full_spec(shape):
        return pl.BlockSpec(shape, lambda i: (0,) * len(shape))

    # TODO(synk): production Mask2Former sizes (E=256, S ~16-32k pixels) need an S-tiled
    # online-softmax (flash-style) structure to fit VMEM; not needed at these shapes.
    out = pl.pallas_call(
        functools.partial(_cross_attn_kernel, nhead=nhead, batch=B),
        out_shape=jax.ShapeDtypeStruct((L * B, E), tgt.dtype),
        grid=(1,),  # whole (tiny) problem in one step: amortizes per-step pipeline overhead
        in_specs=[full_spec((L * B, E)), full_spec((S * B, E)),
                  full_spec((L * B, E)), full_spec((S * B, E)),
                  full_spec((E, E)), full_spec((E, E)), full_spec((E, E)), full_spec((E, E)),
                  full_spec((1, E)), full_spec((1, E)), full_spec((1, E)), full_spec((1, E)),
                  full_spec((1, E)), full_spec((1, E))],
        out_specs=full_spec((L * B, E)),
        compiler_params=pltpu.CompilerParams(dimension_semantics=("arbitrary",)),
    )(tgt_f, mem_f, qpos_f, kpos_f, wq_s, wk, wv, wo, bq2, bk2, bv2, bo2, gamma2, beta2)

    return out.reshape(L, B, E)


def _reference(tgt, memory, pos, query_pos, params, nhead):
    """Pure-JAX reference mirroring nn.MultiheadAttention + residual + LayerNorm."""
    wq, wk, wv, wo, bq, bk, bv, bo, gamma, beta = params
    L, B, E = tgt.shape
    Dh = E // nhead
    q = jnp.einsum('lbe,ef->lbf', tgt + query_pos, wq) + bq
    k = jnp.einsum('sbe,ef->sbf', memory + pos, wk) + bk
    v = jnp.einsum('sbe,ef->sbf', memory, wv) + bv
    q = q * (Dh ** -0.5)
    qh = q.reshape(L, B, nhead, Dh)
    kh = k.reshape(-1, B, nhead, Dh)
    vh = v.reshape(-1, B, nhead, Dh)
    scores = jnp.einsum('lbhd,sbhd->bhls', qh, kh)
    p = jax.nn.softmax(scores, axis=-1)
    o = jnp.einsum('bhls,sbhd->lbhd', p, vh).reshape(L, B, E)
    attn_out = jnp.einsum('lbe,ef->lbf', o, wo) + bo
    x = tgt + attn_out
    mean = x.mean(-1, keepdims=True)
    var = ((x - mean) ** 2).mean(-1, keepdims=True)
    return (x - mean) / jnp.sqrt(var + 1e-5) * gamma + beta


def _xavier_uniform(key, shape):
    limit = math.sqrt(6.0 / (shape[0] + shape[1]))
    return jax.random.uniform(key, shape, jnp.float32, -limit, limit)


if __name__ == "__main__":
    d_model, nhead = 32, 4
    L, S, B = 8, 16, 2          # num queries, memory length, batch

    key = jax.random.PRNGKey(0)
    k_tgt, k_mem, k_pos, k_qpos, k_wq, k_wk, k_wv, k_wo = jax.random.split(key, 8)

    tgt = jax.random.normal(k_tgt, (L, B, d_model), jnp.float32)
    memory = jax.random.normal(k_mem, (S, B, d_model), jnp.float32)
    pos = jax.random.normal(k_pos, (S, B, d_model), jnp.float32)
    query_pos = jax.random.normal(k_qpos, (L, B, d_model), jnp.float32)

    # Deterministic parameter init (xavier_uniform weights, zero biases, LN gamma=1/beta=0),
    # matching the module's _reset_parameters + PyTorch defaults.
    params = (
        _xavier_uniform(k_wq, (d_model, d_model)),   # Wq (applied as x @ Wq)
        _xavier_uniform(k_wk, (d_model, d_model)),   # Wk
        _xavier_uniform(k_wv, (d_model, d_model)),   # Wv
        _xavier_uniform(k_wo, (d_model, d_model)),   # out_proj weight
        jnp.zeros((d_model,), jnp.float32),          # bq
        jnp.zeros((d_model,), jnp.float32),          # bk
        jnp.zeros((d_model,), jnp.float32),          # bv
        jnp.zeros((d_model,), jnp.float32),          # bo
        jnp.ones((d_model,), jnp.float32),           # LayerNorm gamma
        jnp.zeros((d_model,), jnp.float32),          # LayerNorm beta
    )

    out = cross_attention_layer(tgt, memory, pos, query_pos, params, nhead)
    out = jax.block_until_ready(out)

    ref = _reference(tgt, memory, pos, query_pos, params, nhead)
    assert out.shape == (L, B, d_model)
    assert jnp.allclose(out, ref, rtol=1e-4, atol=1e-4), "mismatch vs pure-JAX reference"

    print("KERNEL_OK")
</pallas_src>

<mosaic_0001>
module attributes {stable_mosaic.version = 11 : i64} {
  func.func @_cross_attn_kernel(%arg0: i32, %arg1: memref<16x32xf32, #tpu.memory_space<vmem>>, %arg2: memref<32x32xf32, #tpu.memory_space<vmem>>, %arg3: memref<16x32xf32, #tpu.memory_space<vmem>>, %arg4: memref<32x32xf32, #tpu.memory_space<vmem>>, %arg5: memref<32x32xf32, #tpu.memory_space<vmem>>, %arg6: memref<32x32xf32, #tpu.memory_space<vmem>>, %arg7: memref<32x32xf32, #tpu.memory_space<vmem>>, %arg8: memref<32x32xf32, #tpu.memory_space<vmem>>, %arg9: memref<1x32xf32, #tpu.memory_space<vmem>>, %arg10: memref<1x32xf32, #tpu.memory_space<vmem>>, %arg11: memref<1x32xf32, #tpu.memory_space<vmem>>, %arg12: memref<1x32xf32, #tpu.memory_space<vmem>>, %arg13: memref<1x32xf32, #tpu.memory_space<vmem>>, %arg14: memref<1x32xf32, #tpu.memory_space<vmem>>, %arg15: memref<16x32xf32, #tpu.memory_space<vmem>>) attributes {dimension_semantics = [#tpu.dimension_semantics<arbitrary>], iteration_bounds = array<i64: 1>, scalar_prefetch = 0 : i64, scratch_operands = 0 : i64, tpu.core_type = #tpu.core_type<tc>, window_params = [{pipeline_mode = #tpu.pipeline_mode<synchronous>, transform_indices = @transform_0, window_bounds = array<i64: 16, 32>}, {pipeline_mode = #tpu.pipeline_mode<synchronous>, transform_indices = @transform_1, window_bounds = array<i64: 32, 32>}, {pipeline_mode = #tpu.pipeline_mode<synchronous>, transform_indices = @transform_2, window_bounds = array<i64: 16, 32>}, {pipeline_mode = #tpu.pipeline_mode<synchronous>, transform_indices = @transform_3, window_bounds = array<i64: 32, 32>}, {pipeline_mode = #tpu.pipeline_mode<synchronous>, transform_indices = @transform_4, window_bounds = array<i64: 32, 32>}, {pipeline_mode = #tpu.pipeline_mode<synchronous>, transform_indices = @transform_5, window_bounds = array<i64: 32, 32>}, {pipeline_mode = #tpu.pipeline_mode<synchronous>, transform_indices = @transform_6, window_bounds = array<i64: 32, 32>}, {pipeline_mode = #tpu.pipeline_mode<synchronous>, transform_indices = @transform_7, window_bounds = array<i64: 32, 32>}, {pipeline_mode = #tpu.pipeline_mode<synchronous>, transform_indices = @transform_8, window_bounds = array<i64: 1, 32>}, {pipeline_mode = #tpu.pipeline_mode<synchronous>, transform_indices = @transform_9, window_bounds = array<i64: 1, 32>}, {pipeline_mode = #tpu.pipeline_mode<synchronous>, transform_indices = @transform_10, window_bounds = array<i64: 1, 32>}, {pipeline_mode = #tpu.pipeline_mode<synchronous>, transform_indices = @transform_11, window_bounds = array<i64: 1, 32>}, {pipeline_mode = #tpu.pipeline_mode<synchronous>, transform_indices = @transform_12, window_bounds = array<i64: 1, 32>}, {pipeline_mode = #tpu.pipeline_mode<synchronous>, transform_indices = @transform_13, window_bounds = array<i64: 1, 32>}, {pipeline_mode = #tpu.pipeline_mode<synchronous>, transform_indices = @transform_14, window_bounds = array<i64: 16, 32>}]} {
    %c0 = arith.constant 0 : index
    %c0_0 = arith.constant 0 : index
    %0 = vector.load %arg1[%c0, %c0_0] : memref<16x32xf32, #tpu.memory_space<vmem>>, vector<16x32xf32>
    %c0_1 = arith.constant 0 : index
    %c0_2 = arith.constant 0 : index
    %1 = vector.load %arg3[%c0_1, %c0_2] : memref<16x32xf32, #tpu.memory_space<vmem>>, vector<16x32xf32>
    %2 = arith.addf %0, %1 : vector<16x32xf32>
    %c0_3 = arith.constant 0 : index
    %c0_4 = arith.constant 0 : index
    %3 = vector.load %arg2[%c0_3, %c0_4] : memref<32x32xf32, #tpu.memory_space<vmem>>, vector<32x32xf32>
    %c0_5 = arith.constant 0 : index
    %c0_6 = arith.constant 0 : index
    %4 = vector.load %arg4[%c0_5, %c0_6] : memref<32x32xf32, #tpu.memory_space<vmem>>, vector<32x32xf32>
    %5 = arith.addf %3, %4 : vector<32x32xf32>
    %c0_7 = arith.constant 0 : index
    %c0_8 = arith.constant 0 : index
    %6 = vector.load %arg5[%c0_7, %c0_8] : memref<32x32xf32, #tpu.memory_space<vmem>>, vector<32x32xf32>
    %cst = arith.constant dense<0.000000e+00> : vector<16x32xf32>
    %7 = tpu.matmul %2, %6, %cst {dimension_numbers = #tpu.dot_dimension_numbers<[1], [0], [0], [1], [0, 0, 1, 1], [], []>} : vector<16x32xf32>, vector<32x32xf32>, vector<16x32xf32> -> vector<16x32xf32>
    %c0_9 = arith.constant 0 : index
    %c0_10 = arith.constant 0 : index
    %8 = vector.load %arg9[%c0_9, %c0_10] : memref<1x32xf32, #tpu.memory_space<vmem>>, vector<1x32xf32>
    %9 = vector.broadcast %8 : vector<1x32xf32> to vector<16x32xf32>
    %10 = arith.addf %7, %9 : vector<16x32xf32>
    %c0_11 = arith.constant 0 : index
    %c0_12 = arith.constant 0 : index
    %11 = vector.load %arg6[%c0_11, %c0_12] : memref<32x32xf32, #tpu.memory_space<vmem>>, vector<32x32xf32>
    %cst_13 = arith.constant dense<0.000000e+00> : vector<32x32xf32>
    %12 = tpu.matmul %5, %11, %cst_13 {dimension_numbers = #tpu.dot_dimension_numbers<[1], [0], [0], [1], [0, 0, 1, 1], [], []>} : vector<32x32xf32>, vector<32x32xf32>, vector<32x32xf32> -> vector<32x32xf32>
    %c0_14 = arith.constant 0 : index
    %c0_15 = arith.constant 0 : index
    %13 = vector.load %arg10[%c0_14, %c0_15] : memref<1x32xf32, #tpu.memory_space<vmem>>, vector<1x32xf32>
    %14 = vector.broadcast %13 : vector<1x32xf32> to vector<32x32xf32>
    %15 = arith.addf %12, %14 : vector<32x32xf32>
    %c0_16 = arith.constant 0 : index
    %c0_17 = arith.constant 0 : index
    %16 = vector.load %arg7[%c0_16, %c0_17] : memref<32x32xf32, #tpu.memory_space<vmem>>, vector<32x32xf32>
    %cst_18 = arith.constant dense<0.000000e+00> : vector<32x32xf32>
    %17 = tpu.matmul %3, %16, %cst_18 {dimension_numbers = #tpu.dot_dimension_numbers<[1], [0], [0], [1], [0, 0, 1, 1], [], []>} : vector<32x32xf32>, vector<32x32xf32>, vector<32x32xf32> -> vector<32x32xf32>
    %c0_19 = arith.constant 0 : index
    %c0_20 = arith.constant 0 : index
    %18 = vector.load %arg11[%c0_19, %c0_20] : memref<1x32xf32, #tpu.memory_space<vmem>>, vector<1x32xf32>
    %19 = vector.broadcast %18 : vector<1x32xf32> to vector<32x32xf32>
    %20 = arith.addf %17, %19 : vector<32x32xf32>
    %21 = tpu.iota {dimensions = array<i32: 0>} : vector<16x32xi32>
    %c2_i32 = arith.constant 2 : i32
    %c0_i32 = arith.constant 0 : i32
    %22 = arith.cmpi eq, %c2_i32, %c0_i32 : i32
    %c1_i32 = arith.constant 1 : i32
    %23 = arith.select %22, %c1_i32, %c2_i32 : i32
    %24 = vector.broadcast %23 : i32 to vector<16x32xi32>
    %25 = arith.remsi %21, %24 : vector<16x32xi32>
    %c0_i32_21 = arith.constant 0 : i32
    %26 = vector.broadcast %c0_i32_21 : i32 to vector<16x32xi32>
    %27 = arith.cmpi ne, %25, %26 : vector<16x32xi32>
    %c0_i32_22 = arith.constant 0 : i32
    %28 = vector.broadcast %c0_i32_22 : i32 to vector<16x32xi32>
    %29 = arith.cmpi slt, %25, %28 : vector<16x32xi32>
    %c0_i32_23 = arith.constant 0 : i32
    %30 = arith.cmpi slt, %23, %c0_i32_23 : i32
    %31 = vector.broadcast %30 : i1 to vector<16x32xi1>
    %32 = vector.broadcast %31 : vector<16x32xi1> to vector<16x32xi1>
    %33 = arith.xori %29, %32 : vector<16x32xi1>
    %34 = arith.andi %33, %27 : vector<16x32xi1>
    %35 = vector.broadcast %23 : i32 to vector<16x32xi32>
    %36 = arith.addi %25, %35 : vector<16x32xi32>
    %37 = arith.select %34, %36, %25 : vector<16x32xi1>, vector<16x32xi32>
    %38 = tpu.iota {dimensions = array<i32: 1>} : vector<16x32xi32>
    %c2_i32_24 = arith.constant 2 : i32
    %c0_i32_25 = arith.constant 0 : i32
    %39 = arith.cmpi eq, %c2_i32_24, %c0_i32_25 : i32
    %c1_i32_26 = arith.constant 1 : i32
    %40 = arith.select %39, %c1_i32_26, %c2_i32_24 : i32
    %41 = vector.broadcast %40 : i32 to vector<16x32xi32>
    %42 = arith.remsi %38, %41 : vector<16x32xi32>
    %c0_i32_27 = arith.constant 0 : i32
    %43 = vector.broadcast %c0_i32_27 : i32 to vector<16x32xi32>
    %44 = arith.cmpi ne, %42, %43 : vector<16x32xi32>
    %c0_i32_28 = arith.constant 0 : i32
    %45 = vector.broadcast %c0_i32_28 : i32 to vector<16x32xi32>
    %46 = arith.cmpi slt, %42, %45 : vector<16x32xi32>
    %c0_i32_29 = arith.constant 0 : i32
    %47 = arith.cmpi slt, %40, %c0_i32_29 : i32
    %48 = vector.broadcast %47 : i1 to vector<16x32xi1>
    %49 = vector.broadcast %48 : vector<16x32xi1> to vector<16x32xi1>
    %50 = arith.xori %46, %49 : vector<16x32xi1>
    %51 = arith.andi %50, %44 : vector<16x32xi1>
    %52 = vector.broadcast %40 : i32 to vector<16x32xi32>
    %53 = arith.addi %42, %52 : vector<16x32xi32>
    %54 = arith.select %51, %53, %42 : vector<16x32xi1>, vector<16x32xi32>
    %55 = arith.cmpi eq, %37, %54 : vector<16x32xi32>
    %cst_30 = arith.constant 0.000000e+00 : f32
    %cst_31 = arith.constant -1.000000e+30 : f32
    %56 = vector.broadcast %cst_30 : f32 to vector<16x32xf32>
    %57 = vector.broadcast %cst_31 : f32 to vector<16x32xf32>
    %58 = arith.select %55, %56, %57 : vector<16x32xi1>, vector<16x32xf32>
    %c0_32 = arith.constant 0 : index
    %c0_33 = arith.constant 0 : index
    %59 = vector.load %arg8[%c0_32, %c0_33] : memref<32x32xf32, #tpu.memory_space<vmem>>, vector<32x32xf32>
    %cst_34 = arith.constant 0.000000e+00 : f32
    %60 = vector.broadcast %cst_34 : f32 to vector<16x32xf32>
    %61 = vector.extract_strided_slice %10 {offsets = [0, 0], sizes = [16, 8], strides = [1, 1]} : vector<16x32xf32> to vector<16x8xf32>
    %62 = vector.extract_strided_slice %15 {offsets = [0, 0], sizes = [32, 8], strides = [1, 1]} : vector<32x32xf32> to vector<32x8xf32>
    %63 = vector.extract_strided_slice %20 {offsets = [0, 0], sizes = [32, 8], strides = [1, 1]} : vector<32x32xf32> to vector<32x8xf32>
    %cst_35 = arith.constant dense<0.000000e+00> : vector<16x32xf32>
    %64 = tpu.matmul %61, %62, %cst_35 {dimension_numbers = #tpu.dot_dimension_numbers<[1], [1], [0], [0], [0, 0, 1, 0], [], []>} : vector<16x8xf32>, vector<32x8xf32>, vector<16x32xf32> -> vector<16x32xf32>
    %65 = arith.addf %64, %58 : vector<16x32xf32>
    %cst_36 = arith.constant dense<0xFF800000> : vector<16xf32>
    %66 = vector.multi_reduction <maximumf>, %65, %cst_36 [1] : vector<16x32xf32> to vector<16xf32>
    %67 = vector.shape_cast %66 : vector<16xf32> to vector<16x1xf32>
    %68 = vector.broadcast %67 : vector<16x1xf32> to vector<16x32xf32>
    %69 = arith.subf %65, %68 : vector<16x32xf32>
    %70 = math.exp %69 : vector<16x32xf32>
    %cst_37 = arith.constant dense<0.000000e+00> : vector<16xf32>
    %71 = vector.multi_reduction <add>, %70, %cst_37 [1] : vector<16x32xf32> to vector<16xf32>
    %72 = vector.shape_cast %71 : vector<16xf32> to vector<16x1xf32>
    %73 = tpu.reciprocal %72 : vector<16x1xf32> -> vector<16x1xf32>
    %74 = vector.broadcast %73 : vector<16x1xf32> to vector<16x32xf32>
    %75 = arith.mulf %70, %74 : vector<16x32xf32>
    %cst_38 = arith.constant dense<0.000000e+00> : vector<16x8xf32>
    %76 = tpu.matmul %75, %63, %cst_38 {dimension_numbers = #tpu.dot_dimension_numbers<[1], [0], [0], [1], [0, 0, 1, 1], [], []>} : vector<16x32xf32>, vector<32x8xf32>, vector<16x8xf32> -> vector<16x8xf32>
    %77 = vector.extract_strided_slice %59 {offsets = [0, 0], sizes = [8, 32], strides = [1, 1]} : vector<32x32xf32> to vector<8x32xf32>
    %cst_39 = arith.constant dense<0.000000e+00> : vector<16x32xf32>
    %78 = tpu.matmul %76, %77, %cst_39 {dimension_numbers = #tpu.dot_dimension_numbers<[1], [0], [0], [1], [0, 0, 1, 1], [], []>} : vector<16x8xf32>, vector<8x32xf32>, vector<16x32xf32> -> vector<16x32xf32>
    %79 = arith.addf %60, %78 : vector<16x32xf32>
    %80 = vector.extract_strided_slice %10 {offsets = [0, 8], sizes = [16, 8], strides = [1, 1]} : vector<16x32xf32> to vector<16x8xf32>
    %81 = vector.extract_strided_slice %15 {offsets = [0, 8], sizes = [32, 8], strides = [1, 1]} : vector<32x32xf32> to vector<32x8xf32>
    %82 = vector.extract_strided_slice %20 {offsets = [0, 8], sizes = [32, 8], strides = [1, 1]} : vector<32x32xf32> to vector<32x8xf32>
    %cst_40 = arith.constant dense<0.000000e+00> : vector<16x32xf32>
    %83 = tpu.matmul %80, %81, %cst_40 {dimension_numbers = #tpu.dot_dimension_numbers<[1], [1], [0], [0], [0, 0, 1, 0], [], []>} : vector<16x8xf32>, vector<32x8xf32>, vector<16x32xf32> -> vector<16x32xf32>
    %84 = arith.addf %83, %58 : vector<16x32xf32>
    %cst_41 = arith.constant dense<0xFF800000> : vector<16xf32>
    %85 = vector.multi_reduction <maximumf>, %84, %cst_41 [1] : vector<16x32xf32> to vector<16xf32>
    %86 = vector.shape_cast %85 : vector<16xf32> to vector<16x1xf32>
    %87 = vector.broadcast %86 : vector<16x1xf32> to vector<16x32xf32>
    %88 = arith.subf %84, %87 : vector<16x32xf32>
    %89 = math.exp %88 : vector<16x32xf32>
    %cst_42 = arith.constant dense<0.000000e+00> : vector<16xf32>
    %90 = vector.multi_reduction <add>, %89, %cst_42 [1] : vector<16x32xf32> to vector<16xf32>
    %91 = vector.shape_cast %90 : vector<16xf32> to vector<16x1xf32>
    %92 = tpu.reciprocal %91 : vector<16x1xf32> -> vector<16x1xf32>
    %93 = vector.broadcast %92 : vector<16x1xf32> to vector<16x32xf32>
    %94 = arith.mulf %89, %93 : vector<16x32xf32>
    %cst_43 = arith.constant dense<0.000000e+00> : vector<16x8xf32>
    %95 = tpu.matmul %94, %82, %cst_43 {dimension_numbers = #tpu.dot_dimension_numbers<[1], [0], [0], [1], [0, 0, 1, 1], [], []>} : vector<16x32xf32>, vector<32x8xf32>, vector<16x8xf32> -> vector<16x8xf32>
    %96 = vector.extract_strided_slice %59 {offsets = [8, 0], sizes = [8, 32], strides = [1, 1]} : vector<32x32xf32> to vector<8x32xf32>
    %cst_44 = arith.constant dense<0.000000e+00> : vector<16x32xf32>
    %97 = tpu.matmul %95, %96, %cst_44 {dimension_numbers = #tpu.dot_dimension_numbers<[1], [0], [0], [1], [0, 0, 1, 1], [], []>} : vector<16x8xf32>, vector<8x32xf32>, vector<16x32xf32> -> vector<16x32xf32>
    %98 = arith.addf %79, %97 : vector<16x32xf32>
    %99 = vector.extract_strided_slice %10 {offsets = [0, 16], sizes = [16, 8], strides = [1, 1]} : vector<16x32xf32> to vector<16x8xf32>
    %100 = vector.extract_strided_slice %15 {offsets = [0, 16], sizes = [32, 8], strides = [1, 1]} : vector<32x32xf32> to vector<32x8xf32>
    %101 = vector.extract_strided_slice %20 {offsets = [0, 16], sizes = [32, 8], strides = [1, 1]} : vector<32x32xf32> to vector<32x8xf32>
    %cst_45 = arith.constant dense<0.000000e+00> : vector<16x32xf32>
    %102 = tpu.matmul %99, %100, %cst_45 {dimension_numbers = #tpu.dot_dimension_numbers<[1], [1], [0], [0], [0, 0, 1, 0], [], []>} : vector<16x8xf32>, vector<32x8xf32>, vector<16x32xf32> -> vector<16x32xf32>
    %103 = arith.addf %102, %58 : vector<16x32xf32>
    %cst_46 = arith.constant dense<0xFF800000> : vector<16xf32>
    %104 = vector.multi_reduction <maximumf>, %103, %cst_46 [1] : vector<16x32xf32> to vector<16xf32>
    %105 = vector.shape_cast %104 : vector<16xf32> to vector<16x1xf32>
    %106 = vector.broadcast %105 : vector<16x1xf32> to vector<16x32xf32>
    %107 = arith.subf %103, %106 : vector<16x32xf32>
    %108 = math.exp %107 : vector<16x32xf32>
    %cst_47 = arith.constant dense<0.000000e+00> : vector<16xf32>
    %109 = vector.multi_reduction <add>, %108, %cst_47 [1] : vector<16x32xf32> to vector<16xf32>
    %110 = vector.shape_cast %109 : vector<16xf32> to vector<16x1xf32>
    %111 = tpu.reciprocal %110 : vector<16x1xf32> -> vector<16x1xf32>
    %112 = vector.broadcast %111 : vector<16x1xf32> to vector<16x32xf32>
    %113 = arith.mulf %108, %112 : vector<16x32xf32>
    %cst_48 = arith.constant dense<0.000000e+00> : vector<16x8xf32>
    %114 = tpu.matmul %113, %101, %cst_48 {dimension_numbers = #tpu.dot_dimension_numbers<[1], [0], [0], [1], [0, 0, 1, 1], [], []>} : vector<16x32xf32>, vector<32x8xf32>, vector<16x8xf32> -> vector<16x8xf32>
    %115 = vector.extract_strided_slice %59 {offsets = [16, 0], sizes = [8, 32], strides = [1, 1]} : vector<32x32xf32> to vector<8x32xf32>
    %cst_49 = arith.constant dense<0.000000e+00> : vector<16x32xf32>
    %116 = tpu.matmul %114, %115, %cst_49 {dimension_numbers = #tpu.dot_dimension_numbers<[1], [0], [0], [1], [0, 0, 1, 1], [], []>} : vector<16x8xf32>, vector<8x32xf32>, vector<16x32xf32> -> vector<16x32xf32>
    %117 = arith.addf %98, %116 : vector<16x32xf32>
    %118 = vector.extract_strided_slice %10 {offsets = [0, 24], sizes = [16, 8], strides = [1, 1]} : vector<16x32xf32> to vector<16x8xf32>
    %119 = vector.extract_strided_slice %15 {offsets = [0, 24], sizes = [32, 8], strides = [1, 1]} : vector<32x32xf32> to vector<32x8xf32>
    %120 = vector.extract_strided_slice %20 {offsets = [0, 24], sizes = [32, 8], strides = [1, 1]} : vector<32x32xf32> to vector<32x8xf32>
    %cst_50 = arith.constant dense<0.000000e+00> : vector<16x32xf32>
    %121 = tpu.matmul %118, %119, %cst_50 {dimension_numbers = #tpu.dot_dimension_numbers<[1], [1], [0], [0], [0, 0, 1, 0], [], []>} : vector<16x8xf32>, vector<32x8xf32>, vector<16x32xf32> -> vector<16x32xf32>
    %122 = arith.addf %121, %58 : vector<16x32xf32>
    %cst_51 = arith.constant dense<0xFF800000> : vector<16xf32>
    %123 = vector.multi_reduction <maximumf>, %122, %cst_51 [1] : vector<16x32xf32> to vector<16xf32>
    %124 = vector.shape_cast %123 : vector<16xf32> to vector<16x1xf32>
    %125 = vector.broadcast %124 : vector<16x1xf32> to vector<16x32xf32>
    %126 = arith.subf %122, %125 : vector<16x32xf32>
    %127 = math.exp %126 : vector<16x32xf32>
    %cst_52 = arith.constant dense<0.000000e+00> : vector<16xf32>
    %128 = vector.multi_reduction <add>, %127, %cst_52 [1] : vector<16x32xf32> to vector<16xf32>
    %129 = vector.shape_cast %128 : vector<16xf32> to vector<16x1xf32>
    %130 = tpu.reciprocal %129 : vector<16x1xf32> -> vector<16x1xf32>
    %131 = vector.broadcast %130 : vector<16x1xf32> to vector<16x32xf32>
    %132 = arith.mulf %127, %131 : vector<16x32xf32>
    %cst_53 = arith.constant dense<0.000000e+00> : vector<16x8xf32>
    %133 = tpu.matmul %132, %120, %cst_53 {dimension_numbers = #tpu.dot_dimension_numbers<[1], [0], [0], [1], [0, 0, 1, 1], [], []>} : vector<16x32xf32>, vector<32x8xf32>, vector<16x8xf32> -> vector<16x8xf32>
    %134 = vector.extract_strided_slice %59 {offsets = [24, 0], sizes = [8, 32], strides = [1, 1]} : vector<32x32xf32> to vector<8x32xf32>
    %cst_54 = arith.constant dense<0.000000e+00> : vector<16x32xf32>
    %135 = tpu.matmul %133, %134, %cst_54 {dimension_numbers = #tpu.dot_dimension_numbers<[1], [0], [0], [1], [0, 0, 1, 1], [], []>} : vector<16x8xf32>, vector<8x32xf32>, vector<16x32xf32> -> vector<16x32xf32>
    %136 = arith.addf %117, %135 : vector<16x32xf32>
    %c0_55 = arith.constant 0 : index
    %c0_56 = arith.constant 0 : index
    %137 = vector.load %arg12[%c0_55, %c0_56] : memref<1x32xf32, #tpu.memory_space<vmem>>, vector<1x32xf32>
    %138 = vector.broadcast %137 : vector<1x32xf32> to vector<16x32xf32>
    %139 = arith.addf %136, %138 : vector<16x32xf32>
    %140 = arith.addf %0, %139 : vector<16x32xf32>
    %cst_57 = arith.constant dense<0.000000e+00> : vector<16xf32>
    %141 = vector.multi_reduction <add>, %140, %cst_57 [1] : vector<16x32xf32> to vector<16xf32>
    %142 = vector.shape_cast %141 : vector<16xf32> to vector<16x1xf32>
    %cst_58 = arith.constant 3.200000e+01 : f32
    %143 = vector.broadcast %cst_58 : f32 to vector<16x1xf32>
    %144 = arith.divf %142, %143 : vector<16x1xf32>
    %145 = vector.broadcast %144 : vector<16x1xf32> to vector<16x32xf32>
    %146 = arith.subf %140, %145 : vector<16x32xf32>
    %147 = arith.mulf %146, %146 : vector<16x32xf32>
    %cst_59 = arith.constant dense<0.000000e+00> : vector<16xf32>
    %148 = vector.multi_reduction <add>, %147, %cst_59 [1] : vector<16x32xf32> to vector<16xf32>
    %149 = vector.shape_cast %148 : vector<16xf32> to vector<16x1xf32>
    %cst_60 = arith.constant 3.200000e+01 : f32
    %150 = vector.broadcast %cst_60 : f32 to vector<16x1xf32>
    %151 = arith.divf %149, %150 : vector<16x1xf32>
    %152 = vector.broadcast %144 : vector<16x1xf32> to vector<16x32xf32>
    %153 = arith.subf %140, %152 : vector<16x32xf32>
    %cst_61 = arith.constant 9.99999974E-6 : f32
    %154 = vector.broadcast %cst_61 : f32 to vector<16x1xf32>
    %155 = arith.addf %151, %154 : vector<16x1xf32>
    %156 = math.rsqrt %155 : vector<16x1xf32>
    %157 = vector.broadcast %156 : vector<16x1xf32> to vector<16x32xf32>
    %158 = arith.mulf %153, %157 : vector<16x32xf32>
    %c0_62 = arith.constant 0 : index
    %c0_63 = arith.constant 0 : index
    %159 = vector.load %arg13[%c0_62, %c0_63] : memref<1x32xf32, #tpu.memory_space<vmem>>, vector<1x32xf32>
    %160 = vector.broadcast %159 : vector<1x32xf32> to vector<16x32xf32>
    %161 = arith.mulf %158, %160 : vector<16x32xf32>
    %c0_64 = arith.constant 0 : index
    %c0_65 = arith.constant 0 : index
    %162 = vector.load %arg14[%c0_64, %c0_65] : memref<1x32xf32, #tpu.memory_space<vmem>>, vector<1x32xf32>
    %163 = vector.broadcast %162 : vector<1x32xf32> to vector<16x32xf32>
    %164 = arith.addf %161, %163 : vector<16x32xf32>
    %c0_66 = arith.constant 0 : index
    %c0_67 = arith.constant 0 : index
    %165 = vector.load %arg15[%c0_66, %c0_67] : memref<16x32xf32, #tpu.memory_space<vmem>>, vector<16x32xf32>
    tpu.vector_store %arg15[%c0_66, %c0_67], %164 {strides = array<i32>} : memref<16x32xf32, #tpu.memory_space<vmem>>, vector<16x32xf32>,
    return
  }
  func.func @transform_0(%arg0: i32) -> (i32, i32) {
    %c0_i32 = arith.constant 0 : i32
    %c0_i32_0 = arith.constant 0 : i32
    %c0_i32_1 = arith.constant 0 : i32
    return %c0_i32, %c0_i32_0 : i32, i32
  }
  func.func @transform_1(%arg0: i32) -> (i32, i32) {
    %c0_i32 = arith.constant 0 : i32
    %c0_i32_0 = arith.constant 0 : i32
    %c0_i32_1 = arith.constant 0 : i32
    return %c0_i32, %c0_i32_0 : i32, i32
  }
  func.func @transform_2(%arg0: i32) -> (i32, i32) {
    %c0_i32 = arith.constant 0 : i32
    %c0_i32_0 = arith.constant 0 : i32
    %c0_i32_1 = arith.constant 0 : i32
    return %c0_i32, %c0_i32_0 : i32, i32
  }
  func.func @transform_3(%arg0: i32) -> (i32, i32) {
    %c0_i32 = arith.constant 0 : i32
    %c0_i32_0 = arith.constant 0 : i32
    %c0_i32_1 = arith.constant 0 : i32
    return %c0_i32, %c0_i32_0 : i32, i32
  }
  func.func @transform_4(%arg0: i32) -> (i32, i32) {
    %c0_i32 = arith.constant 0 : i32
    %c0_i32_0 = arith.constant 0 : i32
    %c0_i32_1 = arith.constant 0 : i32
    return %c0_i32, %c0_i32_0 : i32, i32
  }
  func.func @transform_5(%arg0: i32) -> (i32, i32) {
    %c0_i32 = arith.constant 0 : i32
    %c0_i32_0 = arith.constant 0 : i32
    %c0_i32_1 = arith.constant 0 : i32
    return %c0_i32, %c0_i32_0 : i32, i32
  }
  func.func @transform_6(%arg0: i32) -> (i32, i32) {
    %c0_i32 = arith.constant 0 : i32
    %c0_i32_0 = arith.constant 0 : i32
    %c0_i32_1 = arith.constant 0 : i32
    return %c0_i32, %c0_i32_0 : i32, i32
  }
  func.func @transform_7(%arg0: i32) -> (i32, i32) {
    %c0_i32 = arith.constant 0 : i32
    %c0_i32_0 = arith.constant 0 : i32
    %c0_i32_1 = arith.constant 0 : i32
    return %c0_i32, %c0_i32_0 : i32, i32
  }
  func.func @transform_8(%arg0: i32) -> (i32, i32) {
    %c0_i32 = arith.constant 0 : i32
    %c0_i32_0 = arith.constant 0 : i32
    %c0_i32_1 = arith.constant 0 : i32
    return %c0_i32, %c0_i32_0 : i32, i32
  }
  func.func @transform_9(%arg0: i32) -> (i32, i32) {
    %c0_i32 = arith.constant 0 : i32
    %c0_i32_0 = arith.constant 0 : i32
    %c0_i32_1 = arith.constant 0 : i32
    return %c0_i32, %c0_i32_0 : i32, i32
  }
  func.func @transform_10(%arg0: i32) -> (i32, i32) {
    %c0_i32 = arith.constant 0 : i32
    %c0_i32_0 = arith.constant 0 : i32
    %c0_i32_1 = arith.constant 0 : i32
    return %c0_i32, %c0_i32_0 : i32, i32
  }
  func.func @transform_11(%arg0: i32) -> (i32, i32) {
    %c0_i32 = arith.constant 0 : i32
    %c0_i32_0 = arith.constant 0 : i32
    %c0_i32_1 = arith.constant 0 : i32
    return %c0_i32, %c0_i32_0 : i32, i32
  }
  func.func @transform_12(%arg0: i32) -> (i32, i32) {
    %c0_i32 = arith.constant 0 : i32
    %c0_i32_0 = arith.constant 0 : i32
    %c0_i32_1 = arith.constant 0 : i32
    return %c0_i32, %c0_i32_0 : i32, i32
  }
  func.func @transform_13(%arg0: i32) -> (i32, i32) {
    %c0_i32 = arith.constant 0 : i32
    %c0_i32_0 = arith.constant 0 : i32
    %c0_i32_1 = arith.constant 0 : i32
    return %c0_i32, %c0_i32_0 : i32, i32
  }
  func.func @transform_14(%arg0: i32) -> (i32, i32) {
    %c0_i32 = arith.constant 0 : i32
    %c0_i32_0 = arith.constant 0 : i32
    %c0_i32_1 = arith.constant 0 : i32
    return %c0_i32, %c0_i32_0 : i32, i32
  }
}

</mosaic_0001>

<llo_original>
// kernel: tpu_custom_call.1
$region0: #{tpu_custom_call.1}
  #allocation0 [shape = 'u32[]', space=smem, size = 0x4, offset = 0x4, fixed_abs, tag = 'smem constant byte address 0x4 - core index']
  #allocation1 [shape = 'u32[72,128]{1,0:T(1,128)}', space=vmem, size = 0x9000, scoped, tag = 'internal scratch']
  %s0 = inlined_call_operand.hbm [shape: f32[16,32], index: 0, kind: input, shape index: {}]
  %s1 = inlined_call_operand.hbm [shape: f32[32,32], index: 1, kind: input, shape index: {}]
  %s2 = inlined_call_operand.hbm [shape: f32[16,32], index: 2, kind: input, shape index: {}]
  %s3 = inlined_call_operand.hbm [shape: f32[32,32], index: 3, kind: input, shape index: {}]
  %s4 = inlined_call_operand.hbm [shape: f32[32,32], index: 4, kind: input, shape index: {}]
  %s5 = inlined_call_operand.hbm [shape: f32[32,32], index: 5, kind: input, shape index: {}]
  %s6 = inlined_call_operand.hbm [shape: f32[32,32], index: 6, kind: input, shape index: {}]
  %s7 = inlined_call_operand.hbm [shape: f32[32,32], index: 7, kind: input, shape index: {}]
  %s8 = inlined_call_operand.vmem [shape: f32[1,32], index: 8, kind: input, shape index: {}]
  %s9 = inlined_call_operand.vmem [shape: f32[1,32], index: 9, kind: input, shape index: {}]
  %s10 = inlined_call_operand.vmem [shape: f32[1,32], index: 10, kind: input, shape index: {}]
  %s11 = inlined_call_operand.vmem [shape: f32[1,32], index: 11, kind: input, shape index: {}]
  %s12 = inlined_call_operand.vmem [shape: f32[1,32], index: 12, kind: input, shape index: {}]
  %s13 = inlined_call_operand.vmem [shape: f32[1,32], index: 13, kind: input, shape index: {}]
  %s14 = inlined_call_operand.hbm [shape: f32[16,32], index: 14, kind: output, shape index: {}]
  %s15 = sld [smem:[#allocation0]]
  $region98: #{tpu_custom_call.1} parent=0
    _
  %s17 = ssub.s32 1, %s15
  %s18 = scalar_select 0, %s17, %s15
  $region1: #{tpu_custom_call.1} parent=0
    #allocation2 [shape = 'u8[8192]{0}', space=vmem, size = 0x2000, scoped, tag = 'input window, operand 0, single buffered']
    #allocation3 [shape = 's32[1]{0}', space=sflag, size = 0x4, scoped, tag = 'scoped memory for tpu_custom_call.1']
    #allocation4 [shape = 's32[1]{0}', space=sflag, size = 0x4, scoped, tag = 'scoped memory for tpu_custom_call.1']
    #allocation5 [shape = 'u8[16384]{0}', space=vmem, size = 0x4000, scoped, tag = 'input window, operand 1, single buffered']
    #allocation6 [shape = 's32[1]{0}', space=sflag, size = 0x4, scoped, tag = 'scoped memory for tpu_custom_call.1']
    #allocation7 [shape = 'u8[8192]{0}', space=vmem, size = 0x2000, scoped, tag = 'input window, operand 2, single buffered']
    #allocation8 [shape = 'u8[16384]{0}', space=vmem, size = 0x4000, scoped, tag = 'input window, operand 3, single buffered']
    #allocation9 [shape = 's32[1]{0}', space=sflag, size = 0x4, scoped, tag = 'scoped memory for tpu_custom_call.1']
    #allocation10 [shape = 'u8[16384]{0}', space=vmem, size = 0x4000, scoped, tag = 'input window, operand 4, single buffered']
    #allocation11 [shape = 'u8[16384]{0}', space=vmem, size = 0x4000, scoped, tag = 'input window, operand 5, single buffered']
    #allocation12 [shape = 's32[1]{0}', space=sflag, size = 0x4, scoped, tag = 'scoped memory for tpu_custom_call.1']
    #allocation13 [shape = 'u8[16384]{0}', space=vmem, size = 0x4000, scoped, tag = 'input window, operand 6, single buffered']
    #allocation14 [shape = 'u8[16384]{0}', space=vmem, size = 0x4000, scoped, tag = 'input window, operand 7, single buffered']
    #allocation15 [shape = 's32[1]{0}', space=sflag, size = 0x4, scoped, tag = 'scoped memory for tpu_custom_call.1']
    #allocation16 [shape = 'u8[8192]{0}', space=vmem, size = 0x2000, scoped, tag = 'output window, operand 0, single buffered']
    %19 = vsyncpa [#allocation3], 0
    %20 = vsyncpa [#allocation6], 0
    %21 = vsyncpa [#allocation9], 0
    %22 = vsyncpa [#allocation12], 0
    %23 = vsyncpa [#allocation15], 0
    %24 = vsyncpa [#allocation4], 0
    // Predicated region
    $region2: #{tpu_custom_call.1} parent=1 // pred_check
      _
    $region3: #{tpu_custom_call.1} parent=1 // pred_check_branch
      %26 = sbr.rel (0) target = $region5
    $region4: #{tpu_custom_call.1} parent=1 // pred_region
      %28 = vsyncadd [#allocation3], 0
      %s29 = sshll.u32 %s0, 4
      %s30 = int_to_ptr.hbm [resolvable:$true] %s29
      %s31 = sshll.u32 [#allocation2], 4
      %s32 = int_to_ptr.vmem [resolvable:$true] %s31
      %37 = dma.hbm_to_vmem [thread:$0]  %s30, 256, %s32, [#allocation3], 128, 128, 8
    $region5: #{tpu_custom_call.1} parent=1 // pred_fallthru
      _
    // Predicated region
    $region6: #{tpu_custom_call.1} parent=1 // pred_check
      _
    $region7: #{tpu_custom_call.1} parent=1 // pred_check_branch
      %39 = sbr.rel (0) target = $region9
    $region8: #{tpu_custom_call.1} parent=1 // pred_region
      %41 = vsyncadd [#allocation6], 0
      %s42 = sshll.u32 %s1, 4
      %s43 = int_to_ptr.hbm [resolvable:$true] %s42
      %s44 = sshll.u32 [#allocation5], 4
      %s45 = int_to_ptr.vmem [resolvable:$true] %s44
      %50 = dma.hbm_to_vmem [thread:$0]  %s43, 512, %s45, [#allocation6], 128, 128, 8
    $region9: #{tpu_custom_call.1} parent=1 // pred_fallthru
      _
    // Predicated region
    $region10: #{tpu_custom_call.1} parent=1 // pred_check
      _
    $region11: #{tpu_custom_call.1} parent=1 // pred_check_branch
      %52 = sbr.rel (0) target = $region13
    $region12: #{tpu_custom_call.1} parent=1 // pred_region
      %54 = vsyncadd [#allocation6], 0
      %s55 = sshll.u32 %s2, 4
      %s56 = int_to_ptr.hbm [resolvable:$true] %s55
      %s57 = sshll.u32 [#allocation7], 4
      %s58 = int_to_ptr.vmem [resolvable:$true] %s57
      %63 = dma.hbm_to_vmem [thread:$0]  %s56, 256, %s58, [#allocation6], 128, 128, 8
    $region13: #{tpu_custom_call.1} parent=1 // pred_fallthru
      _
    // Predicated region
    $region14: #{tpu_custom_call.1} parent=1 // pred_check
      _
    $region15: #{tpu_custom_call.1} parent=1 // pred_check_branch
      %65 = sbr.rel (0) target = $region17
    $region16: #{tpu_custom_call.1} parent=1 // pred_region
      %67 = vsyncadd [#allocation9], 0
      %s68 = sshll.u32 %s3, 4
      %s69 = int_to_ptr.hbm [resolvable:$true] %s68
      %s70 = sshll.u32 [#allocation8], 4
      %s71 = int_to_ptr.vmem [resolvable:$true] %s70
      %76 = dma.hbm_to_vmem [thread:$0]  %s69, 512, %s71, [#allocation9], 128, 128, 8
    $region17: #{tpu_custom_call.1} parent=1 // pred_fallthru
      _
    // Predicated region
    $region18: #{tpu_custom_call.1} parent=1 // pred_check
      _
    $region19: #{tpu_custom_call.1} parent=1 // pred_check_branch
      %78 = sbr.rel (0) target = $region21
    $region20: #{tpu_custom_call.1} parent=1 // pred_region
      %80 = vsyncadd [#allocation9], 0
      %s81 = sshll.u32 %s4, 4
      %s82 = int_to_ptr.hbm [resolvable:$true] %s81
      %s83 = sshll.u32 [#allocation10], 4
      %s84 = int_to_ptr.vmem [resolvable:$true] %s83
      %89 = dma.hbm_to_vmem [thread:$0]  %s82, 512, %s84, [#allocation9], 128, 128, 8
    $region21: #{tpu_custom_call.1} parent=1 // pred_fallthru
      _
    // Predicated region
    $region22: #{tpu_custom_call.1} parent=1 // pred_check
      _
    $region23: #{tpu_custom_call.1} parent=1 // pred_check_branch
      %91 = sbr.rel (0) target = $region25
    $region24: #{tpu_custom_call.1} parent=1 // pred_region
      %93 = vsyncadd [#allocation12], 0
      %s94 = sshll.u32 %s5, 4
      %s95 = int_to_ptr.hbm [resolvable:$true] %s94
      %s96 = sshll.u32 [#allocation11], 4
      %s97 = int_to_ptr.vmem [resolvable:$true] %s96
      %102 = dma.hbm_to_vmem [thread:$0]  %s95, 512, %s97, [#allocation12], 128, 128, 8
    $region25: #{tpu_custom_call.1} parent=1 // pred_fallthru
      _
    // Predicated region
    $region26: #{tpu_custom_call.1} parent=1 // pred_check
      _
    $region27: #{tpu_custom_call.1} parent=1 // pred_check_branch
      %104 = sbr.rel (0) target = $region29
    $region28: #{tpu_custom_call.1} parent=1 // pred_region
      %106 = vsyncadd [#allocation12], 0
      %s107 = sshll.u32 %s6, 4
      %s108 = int_to_ptr.hbm [resolvable:$true] %s107
      %s109 = sshll.u32 [#allocation13], 4
      %s110 = int_to_ptr.vmem [resolvable:$true] %s109
      %115 = dma.hbm_to_vmem [thread:$0]  %s108, 512, %s110, [#allocation12], 128, 128, 8
    $region29: #{tpu_custom_call.1} parent=1 // pred_fallthru
      _
    // Predicated region
    $region30: #{tpu_custom_call.1} parent=1 // pred_check
      _
    $region31: #{tpu_custom_call.1} parent=1 // pred_check_branch
      %117 = sbr.rel (0) target = $region33
    $region32: #{tpu_custom_call.1} parent=1 // pred_region
      %119 = vsyncadd [#allocation15], 0
      %s120 = sshll.u32 %s7, 4
      %s121 = int_to_ptr.hbm [resolvable:$true] %s120
      %s122 = sshll.u32 [#allocation14], 4
      %s123 = int_to_ptr.vmem [resolvable:$true] %s122
      %128 = dma.hbm_to_vmem [thread:$0]  %s121, 512, %s123, [#allocation15], 128, 128, 8
    $region33: #{tpu_custom_call.1} parent=1 // pred_fallthru
      _
    // Predicated region
    $region34: #{tpu_custom_call.1} parent=1 // pred_check
      _
    $region35: #{tpu_custom_call.1} parent=1 // pred_check_branch
      %130 = sbr.rel (0) target = $region37
    $region36: #{tpu_custom_call.1} parent=1 // pred_region
      _
    $region37: #{tpu_custom_call.1} parent=1 // pred_fallthru
      _
    // Predicated region
    $region38: #{tpu_custom_call.1} parent=1 // pred_check
      _
    $region39: #{tpu_custom_call.1} parent=1 // pred_check_branch
      %132 = sbr.rel (0) target = $region41
    $region40: #{tpu_custom_call.1} parent=1 // pred_region
      _
    $region41: #{tpu_custom_call.1} parent=1 // pred_fallthru
      _
    // Predicated region
    $region42: #{tpu_custom_call.1} parent=1 // pred_check
      _
    $region43: #{tpu_custom_call.1} parent=1 // pred_check_branch
      %134 = sbr.rel (0) target = $region45
    $region44: #{tpu_custom_call.1} parent=1 // pred_region
      _
    $region45: #{tpu_custom_call.1} parent=1 // pred_fallthru
      _
    // Predicated region
    $region46: #{tpu_custom_call.1} parent=1 // pred_check
      _
    $region47: #{tpu_custom_call.1} parent=1 // pred_check_branch
      %136 = sbr.rel (0) target = $region49
    $region48: #{tpu_custom_call.1} parent=1 // pred_region
      _
    $region49: #{tpu_custom_call.1} parent=1 // pred_fallthru
      _
    // Predicated region
    $region50: #{tpu_custom_call.1} parent=1 // pred_check
      _
    $region51: #{tpu_custom_call.1} parent=1 // pred_check_branch
      %138 = sbr.rel (0) target = $region53
    $region52: #{tpu_custom_call.1} parent=1 // pred_region
      _
    $region53: #{tpu_custom_call.1} parent=1 // pred_fallthru
      _
    // Predicated region
    $region54: #{tpu_custom_call.1} parent=1 // pred_check
      _
    $region55: #{tpu_custom_call.1} parent=1 // pred_check_branch
      %140 = sbr.rel (0) target = $region57
    $region56: #{tpu_custom_call.1} parent=1 // pred_region
      _
    $region57: #{tpu_custom_call.1} parent=1 // pred_fallthru
      _
    // Predicated region
    $region58: #{tpu_custom_call.1} parent=1 // pred_check
      _
    $region59: #{tpu_custom_call.1} parent=1 // pred_check_branch
      %142 = sbr.rel (0) target = $region61
    $region60: #{tpu_custom_call.1} parent=1 // pred_region
      %144 = dma.done [#allocation3], 256
    $region61: #{tpu_custom_call.1} parent=1 // pred_fallthru
      _
    // Predicated region
    $region62: #{tpu_custom_call.1} parent=1 // pred_check
      _
    $region63: #{tpu_custom_call.1} parent=1 // pred_check_branch
      %146 = sbr.rel (0) target = $region65
    $region64: #{tpu_custom_call.1} parent=1 // pred_region
      %148 = dma.done [#allocation6], 512
    $region65: #{tpu_custom_call.1} parent=1 // pred_fallthru
      _
    // Predicated region
    $region66: #{tpu_custom_call.1} parent=1 // pred_check
      _
    $region67: #{tpu_custom_call.1} parent=1 // pred_check_branch
      %150 = sbr.rel (0) target = $region69
    $region68: #{tpu_custom_call.1} parent=1 // pred_region
      %152 = dma.done [#allocation6], 256
    $region69: #{tpu_custom_call.1} parent=1 // pred_fallthru
      _
    // Predicated region
    $region70: #{tpu_custom_call.1} parent=1 // pred_check
      _
    $region71: #{tpu_custom_call.1} parent=1 // pred_check_branch
      %154 = sbr.rel (0) target = $region73
    $region72: #{tpu_custom_call.1} parent=1 // pred_region
      %156 = dma.done [#allocation9], 512
    $region73: #{tpu_custom_call.1} parent=1 // pred_fallthru
      _
    // Predicated region
    $region74: #{tpu_custom_call.1} parent=1 // pred_check
      _
    $region75: #{tpu_custom_call.1} parent=1 // pred_check_branch
      %158 = sbr.rel (0) target = $region77
    $region76: #{tpu_custom_call.1} parent=1 // pred_region
      %160 = dma.done [#allocation9], 512
    $region77: #{tpu_custom_call.1} parent=1 // pred_fallthru
      _
    // Predicated region
    $region78: #{tpu_custom_call.1} parent=1 // pred_check
      _
    $region79: #{tpu_custom_call.1} parent=1 // pred_check_branch
      %162 = sbr.rel (0) target = $region81
    $region80: #{tpu_custom_call.1} parent=1 // pred_region
      %164 = dma.done [#allocation12], 512
    $region81: #{tpu_custom_call.1} parent=1 // pred_fallthru
      _
    // Predicated region
    $region82: #{tpu_custom_call.1} parent=1 // pred_check
      _
    $region83: #{tpu_custom_call.1} parent=1 // pred_check_branch
      %166 = sbr.rel (0) target = $region85
    $region84: #{tpu_custom_call.1} parent=1 // pred_region
      %168 = dma.done [#allocation12], 512
    $region85: #{tpu_custom_call.1} parent=1 // pred_fallthru
      _
    // Predicated region
    $region86: #{tpu_custom_call.1} parent=1 // pred_check
      _
    $region87: #{tpu_custom_call.1} parent=1 // pred_check_branch
      %170 = sbr.rel (0) target = $region89
    $region88: #{tpu_custom_call.1} parent=1 // pred_region
      %172 = dma.done [#allocation15], 512
    $region89: #{tpu_custom_call.1} parent=1 // pred_fallthru
      _
    %v173 = vld [vmem:[#allocation2] sm:$0xff]
    %v174 = vld [vmem:[#allocation2 + $0x8] sm:$0xff]
    %v175 = vld [vmem:[#allocation7] sm:$0xff]
    %v176 = vld [vmem:[#allocation7 + $0x8] sm:$0xff]
    %v177 = vadd.f32 %v173, %v175
    %v178 = vadd.f32 %v174, %v176
    %v179 = vld [vmem:[#allocation5] sm:$0xff]
    %v180 = vld [vmem:[#allocation5 + $0x8] sm:$0xff]
    %v181 = vld [vmem:[#allocation5 + $0x10] sm:$0xff]
    %v182 = vld [vmem:[#allocation5 + $0x18] sm:$0xff]
    %v183 = vld [vmem:[#allocation8] sm:$0xff]
    %v184 = vld [vmem:[#allocation8 + $0x8] sm:$0xff]
    %v185 = vld [vmem:[#allocation8 + $0x10] sm:$0xff]
    %v186 = vld [vmem:[#allocation8 + $0x18] sm:$0xff]
    %v187 = vadd.f32 %v179, %v183
    %v188 = vadd.f32 %v180, %v184
    %v189 = vadd.f32 %v181, %v185
    %v190 = vadd.f32 %v182, %v186
    %v191 = vld [vmem:[#allocation10] sm:$0xff]
    %v192 = vld [vmem:[#allocation10 + $0x8] sm:$0xff]
    %v193 = vld [vmem:[#allocation10 + $0x10] sm:$0xff]
    %v194 = vld [vmem:[#allocation10 + $0x18] sm:$0xff]
    %v195 = vld [vmem:[%s8] sm:$0x1]
    %v197 = vperm.slane %v195, 0
    %vm199 = vcmask 261120
    %v201 = vsel %vm199, %v177, 0
    %v204 = vsel %vm199, %v178, 0
    %206 = vmatpush.msra.mxu0 0.0
    %207 = vmatpush.msra.mxu0 0.0
    %208 = vmatpush.msra.mxu0 0.0
    %209 = vmatpush.msra.mxu0 0.0
    %210 = vmatpush.msra.mxu0 0.0
    %211 = vmatpush.msra.mxu0 0.0
    %212 = vmatpush.msra.mxu0 0.0
    %213 = vmatpush.msra.mxu0 0.0
    %214 = vmatpush.msra.mxu0 0.0
    %215 = vmatpush.msra.mxu0 0.0
    %216 = vmatpush.msra.mxu0 0.0
    %217 = vmatpush.msra.mxu0 0.0
    %218 = vmatpush.msra.mxu0 %v194
    %219 = vmatpush.msra.mxu0 %v193
    %220 = vmatpush.msra.mxu0 %v192
    %221 = vmatpush.msra.mxu0 %v191
    %222 = vmatmul.f32.gmra.mxu0 %v201
    %v223 = vpop.f32.mrf.mxu0
    %v224 = vadd.f32 %v197, %v223
    %225 = vmatmul.f32.gmra.mxu0 %v204
    %v226 = vpop.f32.mrf.mxu0
    %v227 = vadd.f32 %v197, %v226
    %228 = vdwg.mxu0
    %v229 = vld [vmem:[#allocation11] sm:$0xff]
    %v230 = vld [vmem:[#allocation11 + $0x8] sm:$0xff]
    %v231 = vld [vmem:[#allocation11 + $0x10] sm:$0xff]
    %v232 = vld [vmem:[#allocation11 + $0x18] sm:$0xff]
    %v233 = vld [vmem:[%s9] sm:$0x1]
    %v235 = vperm.slane %v233, 0
    %v238 = vsel %vm199, %v187, 0
    %v241 = vsel %vm199, %v188, 0
    %v244 = vsel %vm199, %v189, 0
    %v247 = vsel %vm199, %v190, 0
    %249 = vmatpush.msra.mxu0 0.0
    %250 = vmatpush.msra.mxu0 0.0
    %251 = vmatpush.msra.mxu0 0.0
    %252 = vmatpush.msra.mxu0 0.0
    %253 = vmatpush.msra.mxu0 0.0
    %254 = vmatpush.msra.mxu0 0.0
    %255 = vmatpush.msra.mxu0 0.0
    %256 = vmatpush.msra.mxu0 0.0
    %257 = vmatpush.msra.mxu0 0.0
    %258 = vmatpush.msra.mxu0 0.0
    %259 = vmatpush.msra.mxu0 0.0
    %260 = vmatpush.msra.mxu0 0.0
    %261 = vmatpush.msra.mxu0 %v232
    %262 = vmatpush.msra.mxu0 %v231
    %263 = vmatpush.msra.mxu0 %v230
    %264 = vmatpush.msra.mxu0 %v229
    %265 = vmatmul.f32.gmra.mxu0 %v238
    %v266 = vpop.f32.mrf.mxu0
    %v267 = vadd.f32 %v235, %v266
    %268 = vmatmul.f32.gmra.mxu0 %v241
    %v269 = vpop.f32.mrf.mxu0
    %v270 = vadd.f32 %v235, %v269
    %271 = vmatmul.f32.gmra.mxu0 %v244
    %v272 = vpop.f32.mrf.mxu0
    %v273 = vadd.f32 %v235, %v272
    %274 = vmatmul.f32.gmra.mxu0 %v247
    %v275 = vpop.f32.mrf.mxu0
    %v276 = vadd.f32 %v235, %v275
    %277 = vdwg.mxu0
    %v278 = vld [vmem:[#allocation13] sm:$0xff]
    %v279 = vld [vmem:[#allocation13 + $0x8] sm:$0xff]
    %v280 = vld [vmem:[#allocation13 + $0x10] sm:$0xff]
    %v281 = vld [vmem:[#allocation13 + $0x18] sm:$0xff]
    %v282 = vld [vmem:[%s10] sm:$0x1]
    %v284 = vperm.slane %v282, 0
    %v287 = vsel %vm199, %v179, 0
    %v290 = vsel %vm199, %v180, 0
    %v293 = vsel %vm199, %v181, 0
    %v296 = vsel %vm199, %v182, 0
    %298 = vmatpush.msra.mxu0 0.0
    %299 = vmatpush.msra.mxu0 0.0
    %300 = vmatpush.msra.mxu0 0.0
    %301 = vmatpush.msra.mxu0 0.0
    %302 = vmatpush.msra.mxu0 0.0
    %303 = vmatpush.msra.mxu0 0.0
    %304 = vmatpush.msra.mxu0 0.0
    %305 = vmatpush.msra.mxu0 0.0
    %306 = vmatpush.msra.mxu0 0.0
    %307 = vmatpush.msra.mxu0 0.0
    %308 = vmatpush.msra.mxu0 0.0
    %309 = vmatpush.msra.mxu0 0.0
    %310 = vmatpush.msra.mxu0 %v281
    %311 = vmatpush.msra.mxu0 %v280
    %312 = vmatpush.msra.mxu0 %v279
    %313 = vmatpush.msra.mxu0 %v278
    %314 = vmatmul.f32.gmra.mxu0 %v287
    %v315 = vpop.f32.mrf.mxu0
    %v316 = vadd.f32 %v284, %v315
    %317 = vmatmul.f32.gmra.mxu0 %v290
    %v318 = vpop.f32.mrf.mxu0
    %v319 = vadd.f32 %v284, %v318
    %320 = vmatmul.f32.gmra.mxu0 %v293
    %v321 = vpop.f32.mrf.mxu0
    %v322 = vadd.f32 %v284, %v321
    %323 = vmatmul.f32.gmra.mxu0 %v296
    %v324 = vpop.f32.mrf.mxu0
    %v325 = vadd.f32 %v284, %v324
    %326 = vdwg.mxu0
    %v327 = vlaneseq
    %v328 = vshrl.u32 %v327, 7
    %v329 = vadd.s32 %v328, 8
    %vm330 = vcmp.lt.s32.totalorder %v328, 0
    %v331 = vsub.s32 0, %v328
    %v332 = vsel %vm330, %v331, %v328
    %v333 = vshrl.u32 %v332, 1
    %v334 = vand.u32 %v332, 1
    %v335 = vsub.s32 0, %v334
    %v336 = vsel %vm330, %v335, %v334
    %vm337 = vcmp.lt.s32.totalorder %v329, 0
    %v338 = vsub.s32 0, %v329
    %v339 = vsel %vm337, %v338, %v329
    %v340 = vshrl.u32 %v339, 1
    %v341 = vand.u32 %v339, 1
    %v342 = vsub.s32 0, %v341
    %v343 = vsel %vm337, %v342, %v341
    %vm344 = vcmp.ne.s32.totalorder %v336, 0
    %vm345 = vcmp.ne.s32.totalorder %v343, 0
    %vm346 = vcmp.lt.s32.totalorder %v336, 0
    %vm347 = vcmp.lt.s32.totalorder %v343, 0
    %vm348 = vmand %vm346, %vm344
    %vm349 = vmand %vm347, %vm345
    %v350 = vadd.s32 %v336, 2
    %v351 = vadd.s32 %v343, 2
    %v352 = vsel %vm348, %v350, %v336
    %v353 = vsel %vm349, %v351, %v343
    %v354 = vlaneseq
    %v355 = vand.u32 %v354, 127
    %vm356 = vcmp.lt.s32.totalorder %v355, 0
    %v357 = vsub.s32 0, %v355
    %v358 = vsel %vm356, %v357, %v355
    %v359 = vshrl.u32 %v358, 1
    %v360 = vand.u32 %v358, 1
    %v361 = vsub.s32 0, %v360
    %v362 = vsel %vm356, %v361, %v360
    %vm363 = vcmp.ne.s32.totalorder %v362, 0
    %vm364 = vcmp.lt.s32.totalorder %v362, 0
    %vm365 = vmand %vm364, %vm363
    %v366 = vadd.s32 %v362, 2
    %v367 = vsel %vm365, %v366, %v362
    %vm368 = vcmp.eq.s32.totalorder %v352, %v367
    %vm369 = vcmp.eq.s32.totalorder %v353, %v367
    %v370 = vsel %vm368, 0.0, -1e+30
    %v371 = vsel %vm369, 0.0, -1e+30
    %v372 = vld [vmem:[#allocation14] sm:$0xff]
    %v373 = vld [vmem:[#allocation14 + $0x8] sm:$0xff]
    %v374 = vld [vmem:[#allocation14 + $0x10] sm:$0xff]
    %v375 = vld [vmem:[#allocation14 + $0x18] sm:$0xff]
    %vm376 = vcmask 64512
    %v378 = vsel %vm376, %v224, 0
    %v381 = vsel %vm376, %v227, 0
    %v384 = vsel %vm376, %v267, 0
    %v387 = vsel %vm376, %v270, 0
    %v390 = vsel %vm376, %v273, 0
    %v393 = vsel %vm376, %v276, 0
    %395 = vmatpush.xpose.msra.mxu0 0.0
    %396 = vmatpush.xpose.msra.mxu0 0.0
    %397 = vmatpush.xpose.msra.mxu0 0.0
    %398 = vmatpush.xpose.msra.mxu0 0.0
    %399 = vmatpush.xpose.msra.mxu0 0.0
    %400 = vmatpush.xpose.msra.mxu0 0.0
    %401 = vmatpush.xpose.msra.mxu0 0.0
    %402 = vmatpush.xpose.msra.mxu0 0.0
    %403 = vmatpush.xpose.msra.mxu0 0.0
    %404 = vmatpush.xpose.msra.mxu0 0.0
    %405 = vmatpush.xpose.msra.mxu0 0.0
    %406 = vmatpush.xpose.msra.mxu0 0.0
    %407 = vmatpush.xpose.msra.mxu0 %v393
    %408 = vmatpush.xpose.msra.mxu0 %v390
    %409 = vmatpush.xpose.msra.mxu0 %v387
    %410 = vmatpush.xpose.msra.mxu0 %v384
    %411 = vmatmul.f32.gmra.mxu0 %v378
    %v412 = vpop.f32.mrf.mxu0
    %v413 = vadd.f32 %v370, %v412
    %414 = vmatmul.f32.gmra.mxu0 %v381
    %v415 = vpop.f32.mrf.mxu0
    %v416 = vadd.f32 %v371, %v415
    %417 = vdwg.mxu0
    %v418 = vsel %vm199, %v413, -inf
    %419 = vmax.xlane.f32.xlu0 %v418
    %v420 = vpop.xlane.xlu0 %419
    %v421 = vsel %vm199, %v416, -inf
    %422 = vmax.xlane.f32.xlu0 %v421
    %v423 = vpop.xlane.xlu0 %422
    %v424 = vsub.f32 %v413, %v420
    %v425 = vsub.f32 %v416, %v423
    %v426 = vmul.f32 %v424, 1.442695
    %v427 = vpow.pop %v426
    %v428 = vmul.f32 %v425, 1.442695
    %v429 = vpow.pop %v428
    %v430 = vsel %vm199, %v427, 0.0
    %431 = vadd.xlane.f32.xlu0 %v430
    %v432 = vpop.xlane.xlu0 %431
    %v433 = vsel %vm199, %v429, 0.0
    %434 = vadd.xlane.f32.xlu0 %v433
    %v435 = vpop.xlane.xlu0 %434
    %v436 = vrcp.pop %v432
    %v437 = vmul.f32 %v432, %v436
    %v438 = vsub.f32 1.0, %v437
    %v439 = vmul.f32 %v436, %v438
    %v440 = vadd.f32 %v436, %v439
    %vm441 = vweird.f32 %v432
    %vm442 = vweird.f32 %v436
    %vm443 = vmor %vm441, %vm442
    %v444 = vsel %vm443, %v436, %v440
    %v445 = vand.u32 2147483647, %v432
    %vm446 = vcmp.eq.f32.partialorder %v445, 8.507059e+37
    %v447 = vand.u32 %v432, 2147483648
    %v448 = vor.u32 1.1754944e-38, %v447
    %v449 = vsel %vm446, %v448, %v444
    %v450 = vrcp.pop %v435
    %v451 = vmul.f32 %v435, %v450
    %v452 = vsub.f32 1.0, %v451
    %v453 = vmul.f32 %v450, %v452
    %v454 = vadd.f32 %v450, %v453
    %vm455 = vweird.f32 %v435
    %vm456 = vweird.f32 %v450
    %vm457 = vmor %vm455, %vm456
    %v458 = vsel %vm457, %v450, %v454
    %v459 = vand.u32 2147483647, %v435
    %vm460 = vcmp.eq.f32.partialorder %v459, 8.507059e+37
    %v461 = vand.u32 %v435, 2147483648
    %v462 = vor.u32 1.1754944e-38, %v461
    %v463 = vsel %vm460, %v462, %v458
    %v464 = vmul.f32 %v427, %v449
    %v465 = vmul.f32 %v429, %v463
    %v467 = vsel %vm199, %v464, 0
    %v470 = vsel %vm199, %v465, 0
    %472 = vmatpush.msra.mxu0 0.0
    %473 = vmatpush.msra.mxu0 0.0
    %474 = vmatpush.msra.mxu0 0.0
    %475 = vmatpush.msra.mxu0 0.0
    %476 = vmatpush.msra.mxu0 0.0
    %477 = vmatpush.msra.mxu0 0.0
    %478 = vmatpush.msra.mxu0 0.0
    %479 = vmatpush.msra.mxu0 0.0
    %480 = vmatpush.msra.mxu0 0.0
    %481 = vmatpush.msra.mxu0 0.0
    %482 = vmatpush.msra.mxu0 0.0
    %483 = vmatpush.msra.mxu0 0.0
    %484 = vmatpush.msra.mxu0 %v325
    %485 = vmatpush.msra.mxu0 %v322
    %486 = vmatpush.msra.mxu0 %v319
    %487 = vmatpush.msra.mxu0 %v316
    %488 = vmatmul.f32.gmra.mxu0 %v467
    %v489 = vpop.f32.mrf.mxu0
    %v490 = vadd.f32 0.0, %v489
    %491 = vmatmul.f32.gmra.mxu0 %v470
    %v492 = vpop.f32.mrf.mxu0
    %v493 = vadd.f32 0.0, %v492
    %494 = vdwg.mxu0
    %495 = vrot.lane.b32.xlu0 %v224, 120
    %v496 = vpop.permute.xlu0 %495
    %497 = vrot.lane.b32.xlu0 %v227, 120
    %v498 = vpop.permute.xlu0 %497
    %499 = vrot.lane.b32.xlu0 %v267, 120
    %v500 = vpop.permute.xlu0 %499
    %501 = vrot.lane.b32.xlu0 %v270, 120
    %v502 = vpop.permute.xlu0 %501
    %503 = vrot.lane.b32.xlu0 %v273, 120
    %v504 = vpop.permute.xlu0 %503
    %505 = vrot.lane.b32.xlu0 %v276, 120
    %v506 = vpop.permute.xlu0 %505
    %v507 = vsel %vm376, %v496, 0
    %v509 = vsel %vm376, %v498, 0
    %v511 = vsel %vm376, %v500, 0
    %v513 = vsel %vm376, %v502, 0
    %v515 = vsel %vm376, %v504, 0
    %v517 = vsel %vm376, %v506, 0
    %519 = vmatpush.xpose.msra.mxu0 0.0
    %520 = vmatpush.xpose.msra.mxu0 0.0
    %521 = vmatpush.xpose.msra.mxu0 0.0
    %522 = vmatpush.xpose.msra.mxu0 0.0
    %523 = vmatpush.xpose.msra.mxu0 0.0
    %524 = vmatpush.xpose.msra.mxu0 0.0
    %525 = vmatpush.xpose.msra.mxu0 0.0
    %526 = vmatpush.xpose.msra.mxu0 0.0
    %527 = vmatpush.xpose.msra.mxu0 0.0
    %528 = vmatpush.xpose.msra.mxu0 0.0
    %529 = vmatpush.xpose.msra.mxu0 0.0
    %530 = vmatpush.xpose.msra.mxu0 0.0
    %531 = vmatpush.xpose.msra.mxu0 %v517
    %532 = vmatpush.xpose.msra.mxu0 %v515
    %533 = vmatpush.xpose.msra.mxu0 %v513
    %534 = vmatpush.xpose.msra.mxu0 %v511
    %535 = vmatmul.f32.gmra.mxu0 %v507
    %v536 = vpop.f32.mrf.mxu0
    %v537 = vadd.f32 %v370, %v536
    %538 = vmatmul.f32.gmra.mxu0 %v509
    %v539 = vpop.f32.mrf.mxu0
    %v540 = vadd.f32 %v371, %v539
    %541 = vdwg.mxu0
    %v542 = vsel %vm199, %v537, -inf
    %543 = vmax.xlane.f32.xlu0 %v542
    %v544 = vpop.xlane.xlu0 %543
    %v545 = vsel %vm199, %v540, -inf
    %546 = vmax.xlane.f32.xlu0 %v545
    %v547 = vpop.xlane.xlu0 %546
    %v548 = vsub.f32 %v537, %v544
    %v549 = vsub.f32 %v540, %v547
    %v550 = vmul.f32 %v548, 1.442695
    %v551 = vpow.pop %v550
    %v552 = vmul.f32 %v549, 1.442695
    %v553 = vpow.pop %v552
    %v554 = vsel %vm199, %v551, 0.0
    %555 = vadd.xlane.f32.xlu0 %v554
    %v556 = vpop.xlane.xlu0 %555
    %v557 = vsel %vm199, %v553, 0.0
    %558 = vadd.xlane.f32.xlu0 %v557
    %v559 = vpop.xlane.xlu0 %558
    %v560 = vrcp.pop %v556
    %v561 = vmul.f32 %v556, %v560
    %v562 = vsub.f32 1.0, %v561
    %v563 = vmul.f32 %v560, %v562
    %v564 = vadd.f32 %v560, %v563
    %vm565 = vweird.f32 %v556
    %vm566 = vweird.f32 %v560
    %vm567 = vmor %vm565, %vm566
    %v568 = vsel %vm567, %v560, %v564
    %v569 = vand.u32 2147483647, %v556
    %vm570 = vcmp.eq.f32.partialorder %v569, 8.507059e+37
    %v571 = vand.u32 %v556, 2147483648
    %v572 = vor.u32 1.1754944e-38, %v571
    %v573 = vsel %vm570, %v572, %v568
    %v574 = vrcp.pop %v559
    %v575 = vmul.f32 %v559, %v574
    %v576 = vsub.f32 1.0, %v575
    %v577 = vmul.f32 %v574, %v576
    %v578 = vadd.f32 %v574, %v577
    %vm579 = vweird.f32 %v559
    %vm580 = vweird.f32 %v574
    %vm581 = vmor %vm579, %vm580
    %v582 = vsel %vm581, %v574, %v578
    %v583 = vand.u32 2147483647, %v559
    %vm584 = vcmp.eq.f32.partialorder %v583, 8.507059e+37
    %v585 = vand.u32 %v559, 2147483648
    %v586 = vor.u32 1.1754944e-38, %v585
    %v587 = vsel %vm584, %v586, %v582
    %v588 = vmul.f32 %v551, %v573
    %v589 = vmul.f32 %v553, %v587
    %594 = vrot.lane.b32.xlu0 %v316, 120
    %v595 = vpop.permute.xlu0 %594
    %596 = vrot.lane.b32.xlu0 %v319, 120
    %v597 = vpop.permute.xlu0 %596
    %598 = vrot.lane.b32.xlu0 %v322, 120
    %v599 = vpop.permute.xlu0 %598
    %600 = vrot.lane.b32.xlu0 %v325, 120
    %v601 = vpop.permute.xlu0 %600
    %v607 = vsel %vm199, %v588, 0
    %v610 = vsel %vm199, %v589, 0
    %612 = vmatpush.msra.mxu0 0.0
    %613 = vmatpush.msra.mxu0 0.0
    %614 = vmatpush.msra.mxu0 0.0
    %615 = vmatpush.msra.mxu0 0.0
    %616 = vmatpush.msra.mxu0 0.0
    %617 = vmatpush.msra.mxu0 0.0
    %618 = vmatpush.msra.mxu0 0.0
    %619 = vmatpush.msra.mxu0 0.0
    %620 = vmatpush.msra.mxu0 0.0
    %621 = vmatpush.msra.mxu0 0.0
    %622 = vmatpush.msra.mxu0 0.0
    %623 = vmatpush.msra.mxu0 0.0
    %624 = vmatpush.msra.mxu0 %v601
    %625 = vmatpush.msra.mxu0 %v599
    %626 = vmatpush.msra.mxu0 %v597
    %627 = vmatpush.msra.mxu0 %v595
    %628 = vmatmul.f32.gmra.mxu0 %v607
    %v629 = vpop.f32.mrf.mxu0
    %v630 = vadd.f32 0.0, %v629
    %631 = vmatmul.f32.gmra.mxu0 %v610
    %v632 = vpop.f32.mrf.mxu0
    %v633 = vadd.f32 0.0, %v632
    %634 = vdwg.mxu0
    %v636 = vsel %vm376, %v630, 0
    %v639 = vsel %vm376, %v633, 0
    %641 = vmatpush.msra.mxu0 0.0
    %642 = vmatpush.msra.mxu0 0.0
    %643 = vmatpush.msra.mxu0 0.0
    %644 = vmatpush.msra.mxu0 0.0
    %645 = vmatpush.msra.mxu0 0.0
    %646 = vmatpush.msra.mxu0 0.0
    %647 = vmatpush.msra.mxu0 0.0
    %648 = vmatpush.msra.mxu0 0.0
    %649 = vmatpush.msra.mxu0 0.0
    %650 = vmatpush.msra.mxu0 0.0
    %651 = vmatpush.msra.mxu0 0.0
    %652 = vmatpush.msra.mxu0 0.0
    %653 = vmatpush.msra.mxu0 0.0
    %654 = vmatpush.msra.mxu0 0.0
    %655 = vmatpush.msra.mxu0 0.0
    %656 = vmatpush.msra.mxu0 %v373
    %657 = vmatmul.f32.gmra.mxu0 %v636
    %v658 = vpop.f32.mrf.mxu0
    %v659 = vadd.f32 0.0, %v658
    %660 = vmatmul.f32.gmra.mxu0 %v639
    %v661 = vpop.f32.mrf.mxu0
    %v662 = vadd.f32 0.0, %v661
    %663 = vdwg.mxu0
    %v665 = vsel %vm376, %v490, 0
    %v668 = vsel %vm376, %v493, 0
    %670 = vmatpush.msra.mxu0 0.0
    %671 = vmatpush.msra.mxu0 0.0
    %672 = vmatpush.msra.mxu0 0.0
    %673 = vmatpush.msra.mxu0 0.0
    %674 = vmatpush.msra.mxu0 0.0
    %675 = vmatpush.msra.mxu0 0.0
    %676 = vmatpush.msra.mxu0 0.0
    %677 = vmatpush.msra.mxu0 0.0
    %678 = vmatpush.msra.mxu0 0.0
    %679 = vmatpush.msra.mxu0 0.0
    %680 = vmatpush.msra.mxu0 0.0
    %681 = vmatpush.msra.mxu0 0.0
    %682 = vmatpush.msra.mxu0 0.0
    %683 = vmatpush.msra.mxu0 0.0
    %684 = vmatpush.msra.mxu0 0.0
    %685 = vmatpush.msra.mxu0 %v372
    %686 = vmatmul.f32.gmra.mxu0 %v665
    %v687 = vpop.f32.mrf.mxu0
    %v688 = vadd.f32 %v659, %v687
    %689 = vmatmul.f32.gmra.mxu0 %v668
    %v690 = vpop.f32.mrf.mxu0
    %v691 = vadd.f32 %v662, %v690
    %692 = vdwg.mxu0
    %693 = vrot.lane.b32.xlu0 %v224, 112
    %v694 = vpop.permute.xlu0 %693
    %695 = vrot.lane.b32.xlu0 %v227, 112
    %v696 = vpop.permute.xlu0 %695
    %697 = vrot.lane.b32.xlu0 %v267, 112
    %v698 = vpop.permute.xlu0 %697
    %699 = vrot.lane.b32.xlu0 %v270, 112
    %v700 = vpop.permute.xlu0 %699
    %701 = vrot.lane.b32.xlu0 %v273, 112
    %v702 = vpop.permute.xlu0 %701
    %703 = vrot.lane.b32.xlu0 %v276, 112
    %v704 = vpop.permute.xlu0 %703
    %v705 = vsel %vm376, %v694, 0
    %v707 = vsel %vm376, %v696, 0
    %v709 = vsel %vm376, %v698, 0
    %v711 = vsel %vm376, %v700, 0
    %v713 = vsel %vm376, %v702, 0
    %v715 = vsel %vm376, %v704, 0
    %717 = vmatpush.xpose.msra.mxu0 0.0
    %718 = vmatpush.xpose.msra.mxu0 0.0
    %719 = vmatpush.xpose.msra.mxu0 0.0
    %720 = vmatpush.xpose.msra.mxu0 0.0
    %721 = vmatpush.xpose.msra.mxu0 0.0
    %722 = vmatpush.xpose.msra.mxu0 0.0
    %723 = vmatpush.xpose.msra.mxu0 0.0
    %724 = vmatpush.xpose.msra.mxu0 0.0
    %725 = vmatpush.xpose.msra.mxu0 0.0
    %726 = vmatpush.xpose.msra.mxu0 0.0
    %727 = vmatpush.xpose.msra.mxu0 0.0
    %728 = vmatpush.xpose.msra.mxu0 0.0
    %729 = vmatpush.xpose.msra.mxu0 %v715
    %730 = vmatpush.xpose.msra.mxu0 %v713
    %731 = vmatpush.xpose.msra.mxu0 %v711
    %732 = vmatpush.xpose.msra.mxu0 %v709
    %733 = vmatmul.f32.gmra.mxu0 %v705
    %v734 = vpop.f32.mrf.mxu0
    %v735 = vadd.f32 %v370, %v734
    %736 = vmatmul.f32.gmra.mxu0 %v707
    %v737 = vpop.f32.mrf.mxu0
    %v738 = vadd.f32 %v371, %v737
    %739 = vdwg.mxu0
    %v740 = vsel %vm199, %v735, -inf
    %741 = vmax.xlane.f32.xlu0 %v740
    %v742 = vpop.xlane.xlu0 %741
    %v743 = vsel %vm199, %v738, -inf
    %744 = vmax.xlane.f32.xlu0 %v743
    %v745 = vpop.xlane.xlu0 %744
    %v746 = vsub.f32 %v735, %v742
    %v747 = vsub.f32 %v738, %v745
    %v748 = vmul.f32 %v746, 1.442695
    %v749 = vpow.pop %v748
    %v750 = vmul.f32 %v747, 1.442695
    %v751 = vpow.pop %v750
    %v752 = vsel %vm199, %v749, 0.0
    %753 = vadd.xlane.f32.xlu0 %v752
    %v754 = vpop.xlane.xlu0 %753
    %v755 = vsel %vm199, %v751, 0.0
    %756 = vadd.xlane.f32.xlu0 %v755
    %v757 = vpop.xlane.xlu0 %756
    %v758 = vrcp.pop %v754
    %v759 = vmul.f32 %v754, %v758
    %v760 = vsub.f32 1.0, %v759
    %v761 = vmul.f32 %v758, %v760
    %v762 = vadd.f32 %v758, %v761
    %vm763 = vweird.f32 %v754
    %vm764 = vweird.f32 %v758
    %vm765 = vmor %vm763, %vm764
    %v766 = vsel %vm765, %v758, %v762
    %v767 = vand.u32 2147483647, %v754
    %vm768 = vcmp.eq.f32.partialorder %v767, 8.507059e+37
    %v769 = vand.u32 %v754, 2147483648
    %v770 = vor.u32 1.1754944e-38, %v769
    %v771 = vsel %vm768, %v770, %v766
    %v772 = vrcp.pop %v757
    %v773 = vmul.f32 %v757, %v772
    %v774 = vsub.f32 1.0, %v773
    %v775 = vmul.f32 %v772, %v774
    %v776 = vadd.f32 %v772, %v775
    %vm777 = vweird.f32 %v757
    %vm778 = vweird.f32 %v772
    %vm779 = vmor %vm777, %vm778
    %v780 = vsel %vm779, %v772, %v776
    %v781 = vand.u32 2147483647, %v757
    %vm782 = vcmp.eq.f32.partialorder %v781, 8.507059e+37
    %v783 = vand.u32 %v757, 2147483648
    %v784 = vor.u32 1.1754944e-38, %v783
    %v785 = vsel %vm782, %v784, %v780
    %v786 = vmul.f32 %v749, %v771
    %v787 = vmul.f32 %v751, %v785
    %788 = vrot.lane.b32.xlu0 %v316, 112
    %v789 = vpop.permute.xlu0 %788
    %790 = vrot.lane.b32.xlu0 %v319, 112
    %v791 = vpop.permute.xlu0 %790
    %792 = vrot.lane.b32.xlu0 %v322, 112
    %v793 = vpop.permute.xlu0 %792
    %794 = vrot.lane.b32.xlu0 %v325, 112
    %v795 = vpop.permute.xlu0 %794
    %v801 = vsel %vm199, %v786, 0
    %v804 = vsel %vm199, %v787, 0
    %806 = vmatpush.msra.mxu0 0.0
    %807 = vmatpush.msra.mxu0 0.0
    %808 = vmatpush.msra.mxu0 0.0
    %809 = vmatpush.msra.mxu0 0.0
    %810 = vmatpush.msra.mxu0 0.0
    %811 = vmatpush.msra.mxu0 0.0
    %812 = vmatpush.msra.mxu0 0.0
    %813 = vmatpush.msra.mxu0 0.0
    %814 = vmatpush.msra.mxu0 0.0
    %815 = vmatpush.msra.mxu0 0.0
    %816 = vmatpush.msra.mxu0 0.0
    %817 = vmatpush.msra.mxu0 0.0
    %818 = vmatpush.msra.mxu0 %v795
    %819 = vmatpush.msra.mxu0 %v793
    %820 = vmatpush.msra.mxu0 %v791
    %821 = vmatpush.msra.mxu0 %v789
    %822 = vmatmul.f32.gmra.mxu0 %v801
    %v823 = vpop.f32.mrf.mxu0
    %v824 = vadd.f32 0.0, %v823
    %825 = vmatmul.f32.gmra.mxu0 %v804
    %v826 = vpop.f32.mrf.mxu0
    %v827 = vadd.f32 0.0, %v826
    %828 = vdwg.mxu0
    %v830 = vsel %vm376, %v824, 0
    %v833 = vsel %vm376, %v827, 0
    %835 = vmatpush.msra.mxu0 0.0
    %836 = vmatpush.msra.mxu0 0.0
    %837 = vmatpush.msra.mxu0 0.0
    %838 = vmatpush.msra.mxu0 0.0
    %839 = vmatpush.msra.mxu0 0.0
    %840 = vmatpush.msra.mxu0 0.0
    %841 = vmatpush.msra.mxu0 0.0
    %842 = vmatpush.msra.mxu0 0.0
    %843 = vmatpush.msra.mxu0 0.0
    %844 = vmatpush.msra.mxu0 0.0
    %845 = vmatpush.msra.mxu0 0.0
    %846 = vmatpush.msra.mxu0 0.0
    %847 = vmatpush.msra.mxu0 0.0
    %848 = vmatpush.msra.mxu0 0.0
    %849 = vmatpush.msra.mxu0 0.0
    %850 = vmatpush.msra.mxu0 %v374
    %851 = vmatmul.f32.gmra.mxu0 %v830
    %v852 = vpop.f32.mrf.mxu0
    %v853 = vadd.f32 0.0, %v852
    %854 = vmatmul.f32.gmra.mxu0 %v833
    %v855 = vpop.f32.mrf.mxu0
    %v856 = vadd.f32 0.0, %v855
    %857 = vdwg.mxu0
    %v858 = vadd.f32 %v688, %v853
    %v859 = vadd.f32 %v691, %v856
    %860 = vrot.lane.b32.xlu0 %v224, 104
    %v861 = vpop.permute.xlu0 %860
    %862 = vrot.lane.b32.xlu0 %v227, 104
    %v863 = vpop.permute.xlu0 %862
    %864 = vrot.lane.b32.xlu0 %v267, 104
    %v865 = vpop.permute.xlu0 %864
    %866 = vrot.lane.b32.xlu0 %v270, 104
    %v867 = vpop.permute.xlu0 %866
    %868 = vrot.lane.b32.xlu0 %v273, 104
    %v869 = vpop.permute.xlu0 %868
    %870 = vrot.lane.b32.xlu0 %v276, 104
    %v871 = vpop.permute.xlu0 %870
    %v872 = vsel %vm376, %v861, 0
    %v874 = vsel %vm376, %v863, 0
    %v876 = vsel %vm376, %v865, 0
    %v878 = vsel %vm376, %v867, 0
    %v880 = vsel %vm376, %v869, 0
    %v882 = vsel %vm376, %v871, 0
    %884 = vmatpush.xpose.msra.mxu0 0.0
    %885 = vmatpush.xpose.msra.mxu0 0.0
    %886 = vmatpush.xpose.msra.mxu0 0.0
    %887 = vmatpush.xpose.msra.mxu0 0.0
    %888 = vmatpush.xpose.msra.mxu0 0.0
    %889 = vmatpush.xpose.msra.mxu0 0.0
    %890 = vmatpush.xpose.msra.mxu0 0.0
    %891 = vmatpush.xpose.msra.mxu0 0.0
    %892 = vmatpush.xpose.msra.mxu0 0.0
    %893 = vmatpush.xpose.msra.mxu0 0.0
    %894 = vmatpush.xpose.msra.mxu0 0.0
    %895 = vmatpush.xpose.msra.mxu0 0.0
    %896 = vmatpush.xpose.msra.mxu0 %v882
    %897 = vmatpush.xpose.msra.mxu0 %v880
    %898 = vmatpush.xpose.msra.mxu0 %v878
    %899 = vmatpush.xpose.msra.mxu0 %v876
    %900 = vmatmul.f32.gmra.mxu0 %v872
    %v901 = vpop.f32.mrf.mxu0
    %v902 = vadd.f32 %v370, %v901
    %903 = vmatmul.f32.gmra.mxu0 %v874
    %v904 = vpop.f32.mrf.mxu0
    %v905 = vadd.f32 %v371, %v904
    %906 = vdwg.mxu0
    %v907 = vsel %vm199, %v902, -inf
    %908 = vmax.xlane.f32.xlu0 %v907
    %v909 = vpop.xlane.xlu0 %908
    %v910 = vsel %vm199, %v905, -inf
    %911 = vmax.xlane.f32.xlu0 %v910
    %v912 = vpop.xlane.xlu0 %911
    %v913 = vsub.f32 %v902, %v909
    %v914 = vsub.f32 %v905, %v912
    %v915 = vmul.f32 %v913, 1.442695
    %v916 = vpow.pop %v915
    %v917 = vmul.f32 %v914, 1.442695
    %v918 = vpow.pop %v917
    %v919 = vsel %vm199, %v916, 0.0
    %920 = vadd.xlane.f32.xlu0 %v919
    %v921 = vpop.xlane.xlu0 %920
    %v922 = vsel %vm199, %v918, 0.0
    %923 = vadd.xlane.f32.xlu0 %v922
    %v924 = vpop.xlane.xlu0 %923
    %v925 = vrcp.pop %v921
    %v926 = vmul.f32 %v921, %v925
    %v927 = vsub.f32 1.0, %v926
    %v928 = vmul.f32 %v925, %v927
    %v929 = vadd.f32 %v925, %v928
    %vm930 = vweird.f32 %v921
    %vm931 = vweird.f32 %v925
    %vm932 = vmor %vm930, %vm931
    %v933 = vsel %vm932, %v925, %v929
    %v934 = vand.u32 2147483647, %v921
    %vm935 = vcmp.eq.f32.partialorder %v934, 8.507059e+37
    %v936 = vand.u32 %v921, 2147483648
    %v937 = vor.u32 1.1754944e-38, %v936
    %v938 = vsel %vm935, %v937, %v933
    %v939 = vrcp.pop %v924
    %v940 = vmul.f32 %v924, %v939
    %v941 = vsub.f32 1.0, %v940
    %v942 = vmul.f32 %v939, %v941
    %v943 = vadd.f32 %v939, %v942
    %vm944 = vweird.f32 %v924
    %vm945 = vweird.f32 %v939
    %vm946 = vmor %vm944, %vm945
    %v947 = vsel %vm946, %v939, %v943
    %v948 = vand.u32 2147483647, %v924
    %vm949 = vcmp.eq.f32.partialorder %v948, 8.507059e+37
    %v950 = vand.u32 %v924, 2147483648
    %v951 = vor.u32 1.1754944e-38, %v950
    %v952 = vsel %vm949, %v951, %v947
    %v953 = vmul.f32 %v916, %v938
    %v954 = vmul.f32 %v918, %v952
    %955 = vrot.lane.b32.xlu0 %v316, 104
    %v956 = vpop.permute.xlu0 %955
    %957 = vrot.lane.b32.xlu0 %v319, 104
    %v958 = vpop.permute.xlu0 %957
    %959 = vrot.lane.b32.xlu0 %v322, 104
    %v960 = vpop.permute.xlu0 %959
    %961 = vrot.lane.b32.xlu0 %v325, 104
    %v962 = vpop.permute.xlu0 %961
    %v968 = vsel %vm199, %v953, 0
    %v971 = vsel %vm199, %v954, 0
    %973 = vmatpush.msra.mxu0 0.0
    %974 = vmatpush.msra.mxu0 0.0
    %975 = vmatpush.msra.mxu0 0.0
    %976 = vmatpush.msra.mxu0 0.0
    %977 = vmatpush.msra.mxu0 0.0
    %978 = vmatpush.msra.mxu0 0.0
    %979 = vmatpush.msra.mxu0 0.0
    %980 = vmatpush.msra.mxu0 0.0
    %981 = vmatpush.msra.mxu0 0.0
    %982 = vmatpush.msra.mxu0 0.0
    %983 = vmatpush.msra.mxu0 0.0
    %984 = vmatpush.msra.mxu0 0.0
    %985 = vmatpush.msra.mxu0 %v962
    %986 = vmatpush.msra.mxu0 %v960
    %987 = vmatpush.msra.mxu0 %v958
    %988 = vmatpush.msra.mxu0 %v956
    %989 = vmatmul.f32.gmra.mxu0 %v968
    %v990 = vpop.f32.mrf.mxu0
    %v991 = vadd.f32 0.0, %v990
    %992 = vmatmul.f32.gmra.mxu0 %v971
    %v993 = vpop.f32.mrf.mxu0
    %v994 = vadd.f32 0.0, %v993
    %995 = vdwg.mxu0
    %v997 = vsel %vm376, %v991, 0
    %v1000 = vsel %vm376, %v994, 0
    %1002 = vmatpush.msra.mxu0 0.0
    %1003 = vmatpush.msra.mxu0 0.0
    %1004 = vmatpush.msra.mxu0 0.0
    %1005 = vmatpush.msra.mxu0 0.0
    %1006 = vmatpush.msra.mxu0 0.0
    %1007 = vmatpush.msra.mxu0 0.0
    %1008 = vmatpush.msra.mxu0 0.0
    %1009 = vmatpush.msra.mxu0 0.0
    %1010 = vmatpush.msra.mxu0 0.0
    %1011 = vmatpush.msra.mxu0 0.0
    %1012 = vmatpush.msra.mxu0 0.0
    %1013 = vmatpush.msra.mxu0 0.0
    %1014 = vmatpush.msra.mxu0 0.0
    %1015 = vmatpush.msra.mxu0 0.0
    %1016 = vmatpush.msra.mxu0 0.0
    %1017 = vmatpush.msra.mxu0 %v375
    %1018 = vmatmul.f32.gmra.mxu0 %v997
    %v1019 = vpop.f32.mrf.mxu0
    %v1020 = vadd.f32 0.0, %v1019
    %1021 = vmatmul.f32.gmra.mxu0 %v1000
    %v1022 = vpop.f32.mrf.mxu0
    %v1023 = vadd.f32 0.0, %v1022
    %1024 = vdwg.mxu0
    %v1025 = vadd.f32 %v858, %v1020
    %v1026 = vadd.f32 %v859, %v1023
    %v1027 = vld [vmem:[%s11] sm:$0x1]
    %v1029 = vperm.slane %v1027, 0
    %v1031 = vadd.f32 %v1025, %v1029
    %v1032 = vadd.f32 %v1026, %v1029
    %v1033 = vadd.f32 %v173, %v1031
    %v1034 = vadd.f32 %v174, %v1032
    %v1035 = vsel %vm199, %v1033, 0.0
    %1036 = vadd.xlane.f32.xlu0 %v1035
    %v1037 = vpop.xlane.xlu0 %1036
    %v1038 = vsel %vm199, %v1034, 0.0
    %1039 = vadd.xlane.f32.xlu0 %v1038
    %v1040 = vpop.xlane.xlu0 %1039
    %v1041 = vrcp.pop 32.0
    %v1042 = vmul.f32 32.0, %v1041
    %v1043 = vsub.f32 1.0, %v1042
    %v1044 = vmul.f32 %v1041, %v1043
    %v1045 = vadd.f32 %v1041, %v1044
    %vm1046 = vweird.f32 %v1041
    %v1047 = vsel %vm1046, %v1041, %v1045
    %v1048 = vmul.f32 %v1037, %v1047
    %v1049 = vmul.f32 %v1040, %v1047
    %v1050 = vsub.f32 %v1033, %v1048
    %v1051 = vsub.f32 %v1034, %v1049
    %v1052 = vmul.f32 %v1050, %v1050
    %v1053 = vmul.f32 %v1051, %v1051
    %v1054 = vsel %vm199, %v1052, 0.0
    %1055 = vadd.xlane.f32.xlu0 %v1054
    %v1056 = vpop.xlane.xlu0 %1055
    %v1057 = vsel %vm199, %v1053, 0.0
    %1058 = vadd.xlane.f32.xlu0 %v1057
    %v1059 = vpop.xlane.xlu0 %1058
    %v1060 = vmul.f32 %v1056, %v1047
    %v1061 = vmul.f32 %v1059, %v1047
    %v1062 = vadd.f32 %v1060, 1e-05
    %v1063 = vadd.f32 %v1061, 1e-05
    %v1064 = vrsqrt.pop %v1062
    %v1065 = vmul.f32 %v1064, %v1062
    %v1066 = vmul.f32 %v1065, %v1064
    %v1067 = vmul.f32 0.5, %v1066
    %v1068 = vsub.f32 1.5, %v1067
    %v1069 = vmul.f32 %v1064, %v1068
    %vm1070 = vweird.f32 %v1062
    %vm1071 = vweird.f32 %v1064
    %vm1072 = vmor %vm1070, %vm1071
    %v1073 = vsel %vm1072, %v1064, %v1069
    %v1074 = vrsqrt.pop %v1063
    %v1075 = vmul.f32 %v1074, %v1063
    %v1076 = vmul.f32 %v1075, %v1074
    %v1077 = vmul.f32 0.5, %v1076
    %v1078 = vsub.f32 1.5, %v1077
    %v1079 = vmul.f32 %v1074, %v1078
    %vm1080 = vweird.f32 %v1063
    %vm1081 = vweird.f32 %v1074
    %vm1082 = vmor %vm1080, %vm1081
    %v1083 = vsel %vm1082, %v1074, %v1079
    %v1084 = vmul.f32 %v1050, %v1073
    %v1085 = vmul.f32 %v1051, %v1083
    %v1086 = vld [vmem:[%s12] sm:$0x1]
    %v1088 = vperm.slane %v1086, 0
    %v1090 = vmul.f32 %v1084, %v1088
    %v1091 = vmul.f32 %v1085, %v1088
    %v1092 = vld [vmem:[%s13] sm:$0x1]
    %v1094 = vperm.slane %v1092, 0
    %v1096 = vadd.f32 %v1090, %v1094
    %v1097 = vadd.f32 %v1091, %v1094
    %1098 = vst.msk [vmem:[#allocation16] sm:$0xff] %vm199, %v1096
    %1099 = vst.msk [vmem:[#allocation16 + $0x8] sm:$0xff] %vm199, %v1097
    // Predicated region
    $region90: #{tpu_custom_call.1} parent=1 // pred_check
      _
    $region91: #{tpu_custom_call.1} parent=1 // pred_check_branch
      %1101 = sbr.rel (0) target = $region93
    $region92: #{tpu_custom_call.1} parent=1 // pred_region
      %1103 = vsyncadd [#allocation4], 0
      %s1104 = sshll.u32 [#allocation16], 4
      %s1105 = int_to_ptr.vmem [resolvable:$true] %s1104
      %s1106 = sshll.u32 %s14, 4
      %s1107 = int_to_ptr.hbm [resolvable:$true] %s1106
      %1112 = dma.vmem_to_hbm [thread:$0]  %s1105, 256, %s1107, [#allocation4], 128, 128, 8
    $region93: #{tpu_custom_call.1} parent=1 // pred_fallthru
      _
    // Predicated region
    $region94: #{tpu_custom_call.1} parent=1 // pred_check
      _
    $region95: #{tpu_custom_call.1} parent=1 // pred_check_branch
      %1114 = sbr.rel (0) target = $region97
    $region96: #{tpu_custom_call.1} parent=1 // pred_region
      %1116 = dma.done [#allocation4], 256
    $region97: #{tpu_custom_call.1} parent=1 // pred_fallthru
      _
    %1117 = vsyncpa [#allocation3], 1
    %1118 = vsyncpa [#allocation6], 1
    %1119 = vsyncpa [#allocation9], 1
    %1120 = vsyncpa [#allocation12], 1
    %1121 = vsyncpa [#allocation15], 1
    %1122 = vsyncpa [#allocation4], 1

</llo_original>
